<compile_context>
chip_gen: v5e
topology: v5e:2x2
jax: 0.10.0
libtpu: 0.0.40
codegen_flags: <defaults>
</compile_context>

<pallas_src>
import functools

import jax
import jax.numpy as jnp
from jax import lax
from jax.experimental import pallas as pl
from jax.experimental.pallas import tpu as pltpu

D = 3                      # space dimension
SOFT_BLEND = 20.0
INIT_BONES = (0, 1, 2, 4, 5, 16, 17, 18, 19)

MAX_STEPS = 50
CVG_THRESH = 1e-5
DVG_THRESH = 1.0
BROYDEN_EPS = 1e-6

LBS_MAX_TILE = 2048        # one-shot kernels: amortize per-grid-step overhead
BROYDEN_MAX_TILE = 1024    # fused-loop kernel: keep live loop state moderate


def _round_up(n, m):
    return ((n + m - 1) // m) * m


def _cdiv(a, b):
    return -(-a // b)


def _pick_tile(n_points, batch, max_tile):
    """Lane tile (multiple of 128), clamped so batch * n_tiles >= 2 when
    possible (v7x shards 'parallel' grid axes over its 2 TensorCores)."""
    tile = min(max_tile, _round_up(max(n_points, 1), 128))
    if batch * _cdiv(n_points, tile) < 2 and tile > 128:
        tile = max(128, min(tile, _round_up(_cdiv(n_points, 2), 128)))
    return tile


# ----------------------------------------------------------------------------
# Shared in-kernel math (lane-dense: points on the last, 128-lane axis).
#   xc_t : [B, 3, P]   A_t : [B, 12, J] with A_t[b, k*3+i, j] = tfs[b, j, i, k]
# MLP weights stored transposed ((out, in) weights, (out, 1) biases) so every
# matmul is (out, in) x (in, TILE_P) with TILE_P on the lanes.
# ----------------------------------------------------------------------------
def _mlp_softmax(x, w0, b0, w1, b1, w2, b2):
    """x: (3, T) -> exact softmax skinning weights (J, T)."""
    h = jnp.maximum(jnp.dot(w0, x, preferred_element_type=jnp.float32) + b0, 0.0)
    h = jnp.maximum(jnp.dot(w1, h, preferred_element_type=jnp.float32) + b1, 0.0)
    logits = SOFT_BLEND * (jnp.dot(w2, h, preferred_element_type=jnp.float32) + b2)
    m = jnp.max(logits, axis=0, keepdims=True)
    e = jnp.exp(logits - m)
    # Exact denominator: keeps parity with the exact softmax in the jacfwd /
    # J_inv-init path (approx reciprocal perturbed the converged root).
    return e / jnp.sum(e, axis=0, keepdims=True)


def _lbs_rows(wt, x):
    """wt: (12, T) = A_t @ w ; x: (3, T) -> 3 rows (1, T) of skinned points."""
    return [wt[i:i + 1] * x[0:1] + wt[3 + i:4 + i] * x[1:2]
            + wt[6 + i:7 + i] * x[2:3] + wt[9 + i:10 + i] for i in range(D)]


def _inv3x3_from_cols(wt):
    """wt[3k+i] = M[i, k] (column-major rows of a 3x3).  Returns (9, T) with
    out[3i+k] = M^-1[i, k] (closed-form cofactor inverse, pure lane math)."""
    m00, m10, m20 = wt[0:1], wt[1:2], wt[2:3]
    m01, m11, m21 = wt[3:4], wt[4:5], wt[5:6]
    m02, m12, m22 = wt[6:7], wt[7:8], wt[8:9]
    c00 = m11 * m22 - m12 * m21
    c01 = m02 * m21 - m01 * m22
    c02 = m01 * m12 - m02 * m11
    c10 = m12 * m20 - m10 * m22
    c11 = m00 * m22 - m02 * m20
    c12 = m02 * m10 - m00 * m12
    c20 = m10 * m21 - m11 * m20
    c21 = m01 * m20 - m00 * m21
    c22 = m00 * m11 - m01 * m10
    det = m00 * c00 + m01 * c10 + m02 * c20
    det = jnp.where(jnp.abs(det) < 1e-20, jnp.float32(1e-20), det)  # pad lanes
    inv_det = 1.0 / det
    return jnp.concatenate([c00, c01, c02, c10, c11, c12, c20, c21, c22],
                           axis=0) * inv_det


# ----------------------------------------------------------------------------
# One-shot kernels (public forward_skinning / query_weights API).
# ----------------------------------------------------------------------------
def _lbs_xd_kernel(xc_ref, w0_ref, b0_ref, w1_ref, b1_ref, w2_ref, b2_ref,
                   a_ref, xd_ref):
    x = xc_ref[0]
    w = _mlp_softmax(x, w0_ref[...], b0_ref[...], w1_ref[...], b1_ref[...],
                     w2_ref[...], b2_ref[...])
    wt = jnp.dot(a_ref[0], w, preferred_element_type=jnp.float32)  # (12, T)
    rows = _lbs_rows(wt, x)
    for i in range(D):                       # direct row stores, no concat
        xd_ref[0, i:i + 1, :] = rows[i].astype(xd_ref.dtype)


def _lbs_w_kernel(xc_ref, w0_ref, b0_ref, w1_ref, b1_ref, w2_ref, b2_ref,
                  w_ref):
    x = xc_ref[0]
    w = _mlp_softmax(x, w0_ref[...], b0_ref[...], w1_ref[...], b1_ref[...],
                     w2_ref[...], b2_ref[...])
    w_ref[0] = w.astype(w_ref.dtype)


def _weight_specs(H, J):
    return [
        pl.BlockSpec((H, D), lambda b, p: (0, 0)),
        pl.BlockSpec((H, 1), lambda b, p: (0, 0)),
        pl.BlockSpec((H, H), lambda b, p: (0, 0)),
        pl.BlockSpec((H, 1), lambda b, p: (0, 0)),
        pl.BlockSpec((J, H), lambda b, p: (0, 0)),
        pl.BlockSpec((J, 1), lambda b, p: (0, 0)),
    ]


def _weight_bytes(H, J):
    return 4 * (H * D + H + H * H + H + J * H + J)


@functools.partial(jax.jit, static_argnames=("tile_p",))
def _lbs_xd_call(xc_t, w0, b0, w1, b1, w2, b2, A_t, *, tile_p):
    B, _, Pp = xc_t.shape
    H, J = w0.shape[0], w2.shape[0]
    cost = pl.CostEstimate(
        flops=int(B * Pp * (2 * (D * H + H * H + H * J + 4 * D * J) + 24)),
        transcendentals=int(B * Pp * J),
        bytes_accessed=int(4 * B * Pp * 2 * D + 4 * B * 4 * D * J
                           + _weight_bytes(H, J)))
    return pl.pallas_call(
        _lbs_xd_kernel,
        out_shape=jax.ShapeDtypeStruct((B, D, Pp), jnp.float32),
        grid=(B, Pp // tile_p),
        in_specs=[pl.BlockSpec((1, D, tile_p), lambda b, p: (b, 0, p))]
                 + _weight_specs(H, J)
                 + [pl.BlockSpec((1, 4 * D, J), lambda b, p: (b, 0, 0))],
        out_specs=pl.BlockSpec((1, D, tile_p), lambda b, p: (b, 0, p)),
        compiler_params=pltpu.CompilerParams(
            dimension_semantics=("parallel", "parallel")),
        cost_estimate=cost,
    )(xc_t, w0, b0, w1, b1, w2, b2, A_t)


@functools.partial(jax.jit, static_argnames=("tile_p",))
def _lbs_w_call(xc_t, w0, b0, w1, b1, w2, b2, *, tile_p):
    B, _, Pp = xc_t.shape
    H, J = w0.shape[0], w2.shape[0]
    cost = pl.CostEstimate(
        flops=int(B * Pp * 2 * (D * H + H * H + H * J)),
        transcendentals=int(B * Pp * J),
        bytes_accessed=int(4 * B * Pp * (D + J) + _weight_bytes(H, J)))
    return pl.pallas_call(
        _lbs_w_kernel,
        out_shape=jax.ShapeDtypeStruct((B, J, Pp), jnp.float32),
        grid=(B, Pp // tile_p),
        in_specs=[pl.BlockSpec((1, D, tile_p), lambda b, p: (b, 0, p))]
                 + _weight_specs(H, J),
        out_specs=pl.BlockSpec((1, J, tile_p), lambda b, p: (b, 0, p)),
        compiler_params=pltpu.CompilerParams(
            dimension_semantics=("parallel", "parallel")),
        cost_estimate=cost,
    )(xc_t, w0, b0, w1, b1, w2, b2)


def _tfs_to_At(tfs):
    """A_t[b, k*3+i, j] = tfs[b, j, i, k]  (i: row 0..2, k: col 0..3)."""
    B = tfs.shape[0]
    A = jnp.transpose(tfs[:, :, :D, :], (0, 3, 2, 1))          # [B, 4, 3, J]
    return A.reshape(B, 4 * D, tfs.shape[1])


# ----------------------------------------------------------------------------
# Fused Broyden kernel: whole root-finding loop runs on-chip, per lane tile.
# State layout per tile: x/gx/update/deltas (3, T), J_inv (9, T), norms (1, T).
# ----------------------------------------------------------------------------
def _broyden_kernel(xc0_ref, xd_ref, w0_ref, b0_ref, w1_ref, b1_ref, w2_ref,
                    b2_ref, a_ref, *rest, n_valid, tile_p, eval_mode,
                    max_steps, cvg_thresh, dvg_thresh, eps):
    if eval_mode:
        x_out_ref, diff_ref = rest
    else:
        jinv0_ref, x_out_ref, diff_ref = rest

    w0, b0 = w0_ref[...], b0_ref[...]
    w1, b1 = w1_ref[...], b1_ref[...]
    w2, b2 = w2_ref[...], b2_ref[...]
    A = a_ref[0]                          # (12, J)
    xd_tgt = xd_ref[0]                    # (3, T)
    x0 = xc0_ref[0]                       # (3, T)

    def g(x):                             # forward-skinning residual
        w = _mlp_softmax(x, w0, b0, w1, b1, w2, b2)
        wt = jnp.dot(A, w, preferred_element_type=jnp.float32)
        return jnp.concatenate(_lbs_rows(wt, x), axis=0) - xd_tgt

    def mv(Ji, v):                        # per-point (3,3) @ (3,) over lanes
        rows = [Ji[3 * i:3 * i + 1] * v[0:1] + Ji[3 * i + 1:3 * i + 2] * v[1:2]
                + Ji[3 * i + 2:3 * i + 3] * v[2:3] for i in range(3)]
        return jnp.concatenate(rows, axis=0)

    def vtm(v, Ji):                       # v^T @ Ji
        cols = [v[0:1] * Ji[k:k + 1] + v[1:2] * Ji[3 + k:4 + k]
                + v[2:3] * Ji[6 + k:7 + k] for k in range(3)]
        return jnp.concatenate(cols, axis=0)

    def outer(u, vT):                     # rank-1 outer product -> (9, T)
        return jnp.concatenate([u[i:i + 1] * vT[k:k + 1]
                                for i in range(3) for k in range(3)], axis=0)

    # Pad mask: lane is a real point iff its global index < n_valid.
    lane = lax.broadcasted_iota(jnp.int32, (1, tile_p), 1)
    pad_mask = (pl.program_id(1) * tile_p + lane) < n_valid     # (1, T) bool

    if eval_mode:
        # J_inv_init = (sum_j w_j(x0) * R_j)^-1 fully in-kernel (cofactors).
        w_init = _mlp_softmax(x0, w0, b0, w1, b1, w2, b2)
        wt0 = jnp.dot(A, w_init, preferred_element_type=jnp.float32)
        J_inv0 = _inv3x3_from_cols(wt0)                         # (9, T)
    else:
        J_inv0 = jinv0_ref[0]                                   # (9, T)

    gx0 = g(x0)
    update0 = -mv(J_inv0, gx0)
    norm0 = jnp.sqrt(jnp.sum(gx0 * gx0, axis=0, keepdims=True))
    zeros3 = jnp.zeros_like(gx0)
    ids0_f = pad_mask.astype(jnp.float32)

    def cond_fn(state):
        it, n_active = state[0], state[1]
        return jnp.logical_and(it < max_steps, n_active > 0.5)

    def body_fn(state):
        (it, _, x, gx, J_inv, update, delta_x, delta_gx, gx_norm_opt,
         ids_f) = state
        m = ids_f > 0.5
        delta_x = jnp.where(m, update, delta_x)
        x = jnp.where(m, x + delta_x, x)
        delta_gx = jnp.where(m, g(x) - gx, delta_gx)
        gx = jnp.where(m, gx + delta_gx, gx)

        gx_norm = jnp.sqrt(jnp.sum(gx * gx, axis=0, keepdims=True))
        gx_norm_opt = jnp.minimum(gx_norm, gx_norm_opt)
        m_new = pad_mask & (gx_norm_opt > cvg_thresh) & (gx_norm < dvg_thresh)

        # Rank-1 Broyden update (masked: no-op on converged / padded lanes).
        vT = vtm(delta_x, J_inv)
        a = delta_x - mv(J_inv, delta_gx)
        b = jnp.sum(vT * delta_gx, axis=0, keepdims=True)
        b = jnp.where(b >= 0.0, b + eps, b - eps)
        u = a / b
        J_inv = jnp.where(m_new, J_inv + outer(u, vT), J_inv)
        update = -mv(J_inv, gx)

        ids_f = m_new.astype(jnp.float32)
        return (it + 1, jnp.sum(ids_f), x, gx, J_inv, update, delta_x,
                delta_gx, gx_norm_opt, ids_f)

    state = (jnp.int32(0), jnp.sum(ids0_f), x0, gx0, J_inv0, update0, zeros3,
             zeros3, norm0, ids0_f)
    state = lax.while_loop(cond_fn, body_fn, state)
    # Torch reference aliases x_opt = x, so the result is the final iterate.
    x_out_ref[0] = state[2].astype(x_out_ref.dtype)
    diff_ref[0] = state[8].astype(diff_ref.dtype)


def _broyden_call(params, xc0_t, xd_tgt_t, A_t, jinv0_t, *, n_valid, tile_p,
                  eval_mode):
    w0, b0, w1, b1, w2, b2 = params
    B, _, Pp = xc0_t.shape
    H, J = w0.shape[0], w2.shape[0]

    kernel = functools.partial(
        _broyden_kernel, n_valid=n_valid, tile_p=tile_p, eval_mode=eval_mode,
        max_steps=MAX_STEPS, cvg_thresh=CVG_THRESH, dvg_thresh=DVG_THRESH,
        eps=BROYDEN_EPS)

    in_specs = ([pl.BlockSpec((1, D, tile_p), lambda b, p: (b, 0, p)),
                 pl.BlockSpec((1, D, tile_p), lambda b, p: (b, 0, p))]
                + _weight_specs(H, J)
                + [pl.BlockSpec((1, 4 * D, J), lambda b, p: (b, 0, 0))])
    args = [xc0_t, xd_tgt_t, w0, b0, w1, b1, w2, b2, A_t]
    if not eval_mode:
        in_specs.append(pl.BlockSpec((1, 9, tile_p), lambda b, p: (b, 0, p)))
        args.append(jinv0_t)

    per_pt_iter = 2 * (D * H + H * H + H * J + 4 * D * J) + 170
    io_bytes = (4 * B * Pp * (3 + 3 + 3 + 1) + 4 * B * 4 * D * J
                + _weight_bytes(H, J)
                + (0 if eval_mode else 4 * B * 9 * Pp))
    cost = pl.CostEstimate(
        flops=int(B * Pp * MAX_STEPS * per_pt_iter),
        transcendentals=int(B * Pp * MAX_STEPS * (J + 2)),
        bytes_accessed=int(io_bytes))

    return pl.pallas_call(
        kernel,
        out_shape=(jax.ShapeDtypeStruct((B, D, Pp), jnp.float32),
                   jax.ShapeDtypeStruct((B, 1, Pp), jnp.float32)),
        grid=(B, Pp // tile_p),
        in_specs=in_specs,
        out_specs=(pl.BlockSpec((1, D, tile_p), lambda b, p: (b, 0, p)),
                   pl.BlockSpec((1, 1, tile_p), lambda b, p: (b, 0, p))),
        compiler_params=pltpu.CompilerParams(
            dimension_semantics=("parallel", "parallel")),
        cost_estimate=cost,
    )(*args)


# ----------------------------------------------------------------------------
# Pure-JAX per-point mirror (only for jacfwd; pallas_call has no autodiff).
# ----------------------------------------------------------------------------
def _point_skin(params, x, T):
    w0, b0, w1, b1, w2, b2 = params
    h = jnp.maximum(w0 @ x + b0[:, 0], 0.0)
    h = jnp.maximum(w1 @ h + b1[:, 0], 0.0)
    w = jax.nn.softmax(SOFT_BLEND * (w2 @ h + b2[:, 0]))
    xh = jnp.concatenate([x, jnp.ones((1,), x.dtype)])
    return jnp.einsum('n,nij,j->i', w, T, xh)[:D]


def _gradient_impl(params, xc, tfs):
    """d xd / d xc.  xc: [B,P,3], tfs: [B,J,4,4] -> [B,P,3,3]."""
    jac = jax.jacfwd(lambda p, T: _point_skin(params, p, T), argnums=0)
    return jax.vmap(jax.vmap(jac, in_axes=(0, None)), in_axes=(0, 0))(xc, tfs)


# ----------------------------------------------------------------------------
# Whole search path jitted; padding / transposes happen once, the Broyden
# iteration never leaves the chip.
# ----------------------------------------------------------------------------
@functools.partial(jax.jit, static_argnames=("eval_mode",))
def _search_impl(params, xd, xc_init, tfs, *, eval_mode):
    B, N, I, Dd = xc_init.shape
    P = N * I
    tile = _pick_tile(P, B, BROYDEN_MAX_TILE)
    Pp = _round_up(P, tile)
    A_t = _tfs_to_At(tfs)

    xc0 = jnp.pad(xc_init.reshape(B, P, Dd), ((0, 0), (0, Pp - P), (0, 0)))
    xc0_t = jnp.transpose(xc0, (0, 2, 1))                      # [B,3,Pp]
    xd_tgt = jnp.pad(jnp.repeat(xd, I, axis=1), ((0, 0), (0, Pp - P), (0, 0)))
    xd_tgt_t = jnp.transpose(xd_tgt, (0, 2, 1))                # [B,3,Pp]

    if eval_mode:
        jinv0_t = None                                         # computed in-kernel
    else:
        J_inv = jnp.linalg.inv(_gradient_impl(params, xc0, tfs))   # [B,Pp,3,3]
        jinv0_t = jnp.transpose(J_inv, (0, 2, 3, 1)).reshape(B, 9, Pp)

    x_t, diff_t = _broyden_call(params, xc0_t, xd_tgt_t, A_t, jinv0_t,
                                n_valid=P, tile_p=tile, eval_mode=eval_mode)

    xc_opt_flat = jnp.transpose(x_t, (0, 2, 1))[:, :P]         # [B,P,3]
    diff = diff_t[:, 0, :P]
    xc_opt = xc_opt_flat.reshape(B, N, I, Dd)
    others = {
        'result': xc_opt_flat.reshape(-1, Dd, 1),
        'diff': diff.reshape(-1),
        'valid_ids': (diff < CVG_THRESH).reshape(B, N, I),
    }
    return xc_opt, others


# ----------------------------------------------------------------------------
# ForwardDeformer
# ----------------------------------------------------------------------------
class ForwardDeformer:
    def __init__(self, opt, key):
        self.opt = opt
        net = opt['network']
        d_in, width, d_out = net['d_in'], net['width'], net['d_out']
        k = jax.random.split(key, 6)
        s = 1.0 / jnp.sqrt(width)
        # Deterministic synthetic ImplicitNetwork params (3 -> H -> H -> J),
        # stored transposed ((out, in) weights, (out, 1) biases) for the
        # lane-dense Pallas kernels.
        self.params = (
            jax.random.normal(k[0], (width, d_in), jnp.float32) * 0.5,
            jax.random.normal(k[1], (width, 1), jnp.float32) * 0.1,
            jax.random.normal(k[2], (width, width), jnp.float32) * s,
            jax.random.normal(k[3], (width, 1), jnp.float32) * 0.1,
            jax.random.normal(k[4], (d_out, width), jnp.float32) * s,
            jax.random.normal(k[5], (d_out, 1), jnp.float32) * 0.1,
        )
        self.soft_blend = SOFT_BLEND
        self.init_bones = list(INIT_BONES)
        self.n_joints = d_out
        # TODO(synk): hierarchical_softmax mode is not wired into the kernel;
        # only opt['softmax_mode'] == 'softmax' is supported.
        assert opt['softmax_mode'] == 'softmax'

    # --- Pallas-backed public API -------------------------------------------
    def forward_skinning(self, xc, cond, tfs, mask=None):
        w0, b0, w1, b1, w2, b2 = self.params
        B, N, _ = xc.shape
        tile = _pick_tile(N, B, LBS_MAX_TILE)
        Pp = _round_up(N, tile)
        xc_t = jnp.transpose(jnp.pad(xc, ((0, 0), (0, Pp - N), (0, 0))), (0, 2, 1))
        xd_t = _lbs_xd_call(xc_t, w0, b0, w1, b1, w2, b2, _tfs_to_At(tfs),
                            tile_p=tile)
        return jnp.transpose(xd_t, (0, 2, 1))[:, :N]

    def query_weights(self, xc, cond, mask=None):
        w0, b0, w1, b1, w2, b2 = self.params
        B, N, _ = xc.shape
        tile = _pick_tile(N, B, LBS_MAX_TILE)
        Pp = _round_up(N, tile)
        xc_t = jnp.transpose(jnp.pad(xc, ((0, 0), (0, Pp - N), (0, 0))), (0, 2, 1))
        w_t = _lbs_w_call(xc_t, w0, b0, w1, b1, w2, b2, tile_p=tile)  # [B,J,Pp]
        return jnp.transpose(w_t, (0, 2, 1))[:, :N]                   # [B,N,J]

    def gradient(self, xc, cond, tfs):
        return _gradient_impl(self.params, xc, tfs)

    # --- module methods -------------------------------------------------------
    def init(self, xd, tfs):
        B, N, _ = xd.shape
        xh = jnp.concatenate([xd, jnp.ones((B, N, 1), xd.dtype)], axis=-1)
        xc_init = []
        for i in self.init_bones:
            Tinv = jnp.linalg.inv(tfs[:, i])                    # (B,4,4)
            xc_init.append(jnp.einsum('bij,bpj->bpi', Tinv, xh)[:, :, :D])
        return jnp.stack(xc_init, axis=2)                       # [B,N,I,3]

    def search(self, xd, xc_init, cond, tfs, eval_mode=False):
        return _search_impl(self.params, xd, xc_init, tfs, eval_mode=eval_mode)

    def __call__(self, xd, cond, tfs, eval_mode=False):
        xc_init = self.init(xd, tfs)
        xc_opt, others = self.search(xd, xc_init, cond, tfs, eval_mode=eval_mode)
        if eval_mode:
            return xc_opt, others

        # Training path (gradient-correction trick). Forward values equal
        # xc_opt since correction = xd_opt - stop_grad(xd_opt) == 0 in value.
        # TODO(synk): custom VJP wiring of the correction through the Pallas
        # kernels is not implemented (pallas_call has no autodiff rule).
        xc_opt = jax.lax.stop_gradient(xc_opt)
        B, N, I, Dd = xc_init.shape
        xc_opt_f = xc_opt.reshape(B, N * I, Dd)
        xd_opt = self.forward_skinning(xc_opt_f, cond, tfs)
        grad_inv = jnp.linalg.inv(self.gradient(xc_opt_f, cond, tfs))
        correction = xd_opt - jax.lax.stop_gradient(xd_opt)
        correction = jnp.einsum('bnij,bnj->bni',
                                -jax.lax.stop_gradient(grad_inv), correction)
        xc = (xc_opt_f + correction).reshape(xc_init.shape)
        return xc, others


# ----------------------------------------------------------------------------
if __name__ == "__main__":
    key = jax.random.PRNGKey(0)
    k_param, k_xd, k_rot, k_trs = jax.random.split(key, 4)

    B, N, J = 2, 8, 24
    opt = {'network': {'d_in': 3, 'width': 32, 'd_out': J},
           'softmax_mode': 'softmax'}
    deformer = ForwardDeformer(opt, k_param)

    # Deformed points [B, N, 3]
    xd = jax.random.normal(k_xd, (B, N, 3), jnp.float32) * 0.3

    # Bone transforms [B, J, 4, 4]: near-identity (invertible) rigid-ish maps.
    eye = jnp.eye(3, dtype=jnp.float32)
    R = eye + 0.05 * jax.random.normal(k_rot, (B, J, 3, 3), jnp.float32)
    t = 0.05 * jax.random.normal(k_trs, (B, J, 3, 1), jnp.float32)
    top = jnp.concatenate([R, t], axis=-1)                      # [B,J,3,4]
    bottom = jnp.broadcast_to(
        jnp.array([0.0, 0.0, 0.0, 1.0], jnp.float32), (B, J, 1, 4))
    tfs = jnp.concatenate([top, bottom], axis=-2)               # [B,J,4,4]

    cond = {}

    # Eval-mode forward: fused Broyden kernel with in-kernel J_inv init.
    xc_opt, others = deformer(xd, cond, tfs, eval_mode=True)
    jax.block_until_ready(xc_opt)
    jax.block_until_ready(others['diff'])
    jax.block_until_ready(others['valid_ids'])

    # Training-mode forward: jacfwd-based J_inv init fed into the same kernel.
    xc_train, others_train = deformer(xd, cond, tfs, eval_mode=False)
    jax.block_until_ready(xc_train)

    # Standalone one-shot kernels.
    w = deformer.query_weights(xd, cond)
    xd_skin = deformer.forward_skinning(xd, cond, tfs)
    jax.block_until_ready(w)
    jax.block_until_ready(xd_skin)

    I = len(INIT_BONES)
    assert xc_opt.shape == (B, N, I, 3)
    assert others['valid_ids'].shape == (B, N, I)
    assert xc_train.shape == (B, N, I, 3)
    assert w.shape == (B, N, J)
    assert xd_skin.shape == (B, N, 3)
    print("KERNEL_OK")
</pallas_src>

<mosaic_0001>
module attributes {stable_mosaic.version = 11 : i64} {
  func.func @_broyden_kernel(%arg0: i32, %arg1: i32, %arg2: memref<1x3x128xf32, #tpu.memory_space<vmem>>, %arg3: memref<1x3x128xf32, #tpu.memory_space<vmem>>, %arg4: memref<32x3xf32, #tpu.memory_space<vmem>>, %arg5: memref<32x1xf32, #tpu.memory_space<vmem>>, %arg6: memref<32x32xf32, #tpu.memory_space<vmem>>, %arg7: memref<32x1xf32, #tpu.memory_space<vmem>>, %arg8: memref<24x32xf32, #tpu.memory_space<vmem>>, %arg9: memref<24x1xf32, #tpu.memory_space<vmem>>, %arg10: memref<1x12x24xf32, #tpu.memory_space<vmem>>, %arg11: memref<1x3x128xf32, #tpu.memory_space<vmem>>, %arg12: memref<1x1x128xf32, #tpu.memory_space<vmem>>) attributes {dimension_semantics = [#tpu.dimension_semantics<parallel>, #tpu.dimension_semantics<parallel>], iteration_bounds = array<i64: 2, 1>, scalar_prefetch = 0 : i64, scratch_operands = 0 : i64, tpu.core_type = #tpu.core_type<tc>, window_params = [{transform_indices = @transform_0, window_bounds = array<i64: 1, 3, 128>}, {transform_indices = @transform_1, window_bounds = array<i64: 1, 3, 128>}, {pipeline_mode = #tpu.pipeline_mode<synchronous>, transform_indices = @transform_2, window_bounds = array<i64: 32, 3>}, {pipeline_mode = #tpu.pipeline_mode<synchronous>, transform_indices = @transform_3, window_bounds = array<i64: 32, 1>}, {pipeline_mode = #tpu.pipeline_mode<synchronous>, transform_indices = @transform_4, window_bounds = array<i64: 32, 32>}, {pipeline_mode = #tpu.pipeline_mode<synchronous>, transform_indices = @transform_5, window_bounds = array<i64: 32, 1>}, {pipeline_mode = #tpu.pipeline_mode<synchronous>, transform_indices = @transform_6, window_bounds = array<i64: 24, 32>}, {pipeline_mode = #tpu.pipeline_mode<synchronous>, transform_indices = @transform_7, window_bounds = array<i64: 24, 1>}, {transform_indices = @transform_8, window_bounds = array<i64: 1, 12, 24>}, {transform_indices = @transform_9, window_bounds = array<i64: 1, 3, 128>}, {transform_indices = @transform_10, window_bounds = array<i64: 1, 1, 128>}]} {
    %c0 = arith.constant 0 : index
    %c0_0 = arith.constant 0 : index
    %0 = vector.load %arg4[%c0, %c0_0] : memref<32x3xf32, #tpu.memory_space<vmem>>, vector<32x3xf32>
    %c0_1 = arith.constant 0 : index
    %c0_2 = arith.constant 0 : index
    %1 = vector.load %arg5[%c0_1, %c0_2] : memref<32x1xf32, #tpu.memory_space<vmem>>, vector<32x1xf32>
    %c0_3 = arith.constant 0 : index
    %c0_4 = arith.constant 0 : index
    %2 = vector.load %arg6[%c0_3, %c0_4] : memref<32x32xf32, #tpu.memory_space<vmem>>, vector<32x32xf32>
    %c0_5 = arith.constant 0 : index
    %c0_6 = arith.constant 0 : index
    %3 = vector.load %arg7[%c0_5, %c0_6] : memref<32x1xf32, #tpu.memory_space<vmem>>, vector<32x1xf32>
    %c0_7 = arith.constant 0 : index
    %c0_8 = arith.constant 0 : index
    %4 = vector.load %arg8[%c0_7, %c0_8] : memref<24x32xf32, #tpu.memory_space<vmem>>, vector<24x32xf32>
    %c0_9 = arith.constant 0 : index
    %c0_10 = arith.constant 0 : index
    %5 = vector.load %arg9[%c0_9, %c0_10] : memref<24x1xf32, #tpu.memory_space<vmem>>, vector<24x1xf32>
    %c0_11 = arith.constant 0 : index
    %c0_12 = arith.constant 0 : index
    %c0_13 = arith.constant 0 : index
    %6 = vector.load %arg10[%c0_11, %c0_12, %c0_13] : memref<1x12x24xf32, #tpu.memory_space<vmem>>, vector<1x12x24xf32>
    %7 = vector.shape_cast %6 : vector<1x12x24xf32> to vector<12x24xf32>
    %c0_14 = arith.constant 0 : index
    %c0_15 = arith.constant 0 : index
    %c0_16 = arith.constant 0 : index
    %8 = vector.load %arg3[%c0_14, %c0_15, %c0_16] : memref<1x3x128xf32, #tpu.memory_space<vmem>>, vector<1x3x128xf32>
    %9 = vector.shape_cast %8 : vector<1x3x128xf32> to vector<3x128xf32>
    %c0_17 = arith.constant 0 : index
    %c0_18 = arith.constant 0 : index
    %c0_19 = arith.constant 0 : index
    %10 = vector.load %arg2[%c0_17, %c0_18, %c0_19] : memref<1x3x128xf32, #tpu.memory_space<vmem>>, vector<1x3x128xf32>
    %11 = vector.shape_cast %10 : vector<1x3x128xf32> to vector<3x128xf32>
    %12 = tpu.iota {dimensions = array<i32: 1>} : vector<1x128xi32>
    %c128_i32 = arith.constant 128 : i32
    %13 = arith.muli %arg1, %c128_i32 : i32
    %14 = vector.broadcast %13 : i32 to vector<1x128xi32>
    %15 = arith.addi %14, %12 : vector<1x128xi32>
    %c72_i32 = arith.constant 72 : i32
    %16 = vector.broadcast %c72_i32 : i32 to vector<1x128xi32>
    %17 = arith.cmpi slt, %15, %16 : vector<1x128xi32>
    %cst = arith.constant dense<0.000000e+00> : vector<32x128xf32>
    %18 = tpu.matmul %0, %11, %cst {dimension_numbers = #tpu.dot_dimension_numbers<[1], [0], [0], [1], [0, 0, 1, 1], [], []>} : vector<32x3xf32>, vector<3x128xf32>, vector<32x128xf32> -> vector<32x128xf32>
    %19 = vector.broadcast %1 : vector<32x1xf32> to vector<32x128xf32>
    %20 = arith.addf %18, %19 : vector<32x128xf32>
    %cst_20 = arith.constant 0.000000e+00 : f32
    %21 = vector.broadcast %cst_20 : f32 to vector<32x128xf32>
    %22 = arith.maximumf %20, %21 : vector<32x128xf32>
    %cst_21 = arith.constant dense<0.000000e+00> : vector<32x128xf32>
    %23 = tpu.matmul %2, %22, %cst_21 {dimension_numbers = #tpu.dot_dimension_numbers<[1], [0], [0], [1], [0, 0, 1, 1], [], []>} : vector<32x32xf32>, vector<32x128xf32>, vector<32x128xf32> -> vector<32x128xf32>
    %24 = vector.broadcast %3 : vector<32x1xf32> to vector<32x128xf32>
    %25 = arith.addf %23, %24 : vector<32x128xf32>
    %cst_22 = arith.constant 0.000000e+00 : f32
    %26 = vector.broadcast %cst_22 : f32 to vector<32x128xf32>
    %27 = arith.maximumf %25, %26 : vector<32x128xf32>
    %cst_23 = arith.constant dense<0.000000e+00> : vector<24x128xf32>
    %28 = tpu.matmul %4, %27, %cst_23 {dimension_numbers = #tpu.dot_dimension_numbers<[1], [0], [0], [1], [0, 0, 1, 1], [], []>} : vector<24x32xf32>, vector<32x128xf32>, vector<24x128xf32> -> vector<24x128xf32>
    %29 = vector.broadcast %5 : vector<24x1xf32> to vector<24x128xf32>
    %30 = arith.addf %28, %29 : vector<24x128xf32>
    %cst_24 = arith.constant 2.000000e+01 : f32
    %31 = vector.broadcast %cst_24 : f32 to vector<24x128xf32>
    %32 = arith.mulf %31, %30 : vector<24x128xf32>
    %cst_25 = arith.constant dense<0xFF800000> : vector<128xf32>
    %33 = vector.multi_reduction <maximumf>, %32, %cst_25 [0] : vector<24x128xf32> to vector<128xf32>
    %34 = vector.shape_cast %33 : vector<128xf32> to vector<1x128xf32>
    %35 = vector.broadcast %34 : vector<1x128xf32> to vector<24x128xf32>
    %36 = arith.subf %32, %35 : vector<24x128xf32>
    %37 = math.exp %36 : vector<24x128xf32>
    %cst_26 = arith.constant dense<0.000000e+00> : vector<128xf32>
    %38 = vector.multi_reduction <add>, %37, %cst_26 [0] : vector<24x128xf32> to vector<128xf32>
    %39 = vector.shape_cast %38 : vector<128xf32> to vector<1x128xf32>
    %40 = vector.broadcast %39 : vector<1x128xf32> to vector<24x128xf32>
    %41 = arith.divf %37, %40 : vector<24x128xf32>
    %cst_27 = arith.constant dense<0.000000e+00> : vector<12x128xf32>
    %42 = tpu.matmul %7, %41, %cst_27 {dimension_numbers = #tpu.dot_dimension_numbers<[1], [0], [0], [1], [0, 0, 1, 1], [], []>} : vector<12x24xf32>, vector<24x128xf32>, vector<12x128xf32> -> vector<12x128xf32>
    %43 = vector.extract_strided_slice %42 {offsets = [0, 0], sizes = [1, 128], strides = [1, 1]} : vector<12x128xf32> to vector<1x128xf32>
    %44 = vector.extract_strided_slice %42 {offsets = [1, 0], sizes = [1, 128], strides = [1, 1]} : vector<12x128xf32> to vector<1x128xf32>
    %45 = vector.extract_strided_slice %42 {offsets = [2, 0], sizes = [1, 128], strides = [1, 1]} : vector<12x128xf32> to vector<1x128xf32>
    %46 = vector.extract_strided_slice %42 {offsets = [3, 0], sizes = [1, 128], strides = [1, 1]} : vector<12x128xf32> to vector<1x128xf32>
    %47 = vector.extract_strided_slice %42 {offsets = [4, 0], sizes = [1, 128], strides = [1, 1]} : vector<12x128xf32> to vector<1x128xf32>
    %48 = vector.extract_strided_slice %42 {offsets = [5, 0], sizes = [1, 128], strides = [1, 1]} : vector<12x128xf32> to vector<1x128xf32>
    %49 = vector.extract_strided_slice %42 {offsets = [6, 0], sizes = [1, 128], strides = [1, 1]} : vector<12x128xf32> to vector<1x128xf32>
    %50 = vector.extract_strided_slice %42 {offsets = [7, 0], sizes = [1, 128], strides = [1, 1]} : vector<12x128xf32> to vector<1x128xf32>
    %51 = vector.extract_strided_slice %42 {offsets = [8, 0], sizes = [1, 128], strides = [1, 1]} : vector<12x128xf32> to vector<1x128xf32>
    %52 = arith.mulf %47, %51 : vector<1x128xf32>
    %53 = arith.mulf %50, %48 : vector<1x128xf32>
    %54 = arith.subf %52, %53 : vector<1x128xf32>
    %55 = arith.mulf %49, %48 : vector<1x128xf32>
    %56 = arith.mulf %46, %51 : vector<1x128xf32>
    %57 = arith.subf %55, %56 : vector<1x128xf32>
    %58 = arith.mulf %46, %50 : vector<1x128xf32>
    %59 = arith.mulf %49, %47 : vector<1x128xf32>
    %60 = arith.subf %58, %59 : vector<1x128xf32>
    %61 = arith.mulf %50, %45 : vector<1x128xf32>
    %62 = arith.mulf %44, %51 : vector<1x128xf32>
    %63 = arith.subf %61, %62 : vector<1x128xf32>
    %64 = arith.mulf %43, %51 : vector<1x128xf32>
    %65 = arith.mulf %49, %45 : vector<1x128xf32>
    %66 = arith.subf %64, %65 : vector<1x128xf32>
    %67 = arith.mulf %49, %44 : vector<1x128xf32>
    %68 = arith.mulf %43, %50 : vector<1x128xf32>
    %69 = arith.subf %67, %68 : vector<1x128xf32>
    %70 = arith.mulf %44, %48 : vector<1x128xf32>
    %71 = arith.mulf %47, %45 : vector<1x128xf32>
    %72 = arith.subf %70, %71 : vector<1x128xf32>
    %73 = arith.mulf %46, %45 : vector<1x128xf32>
    %74 = arith.mulf %43, %48 : vector<1x128xf32>
    %75 = arith.subf %73, %74 : vector<1x128xf32>
    %76 = arith.mulf %43, %47 : vector<1x128xf32>
    %77 = arith.mulf %46, %44 : vector<1x128xf32>
    %78 = arith.subf %76, %77 : vector<1x128xf32>
    %79 = arith.mulf %43, %54 : vector<1x128xf32>
    %80 = arith.mulf %46, %63 : vector<1x128xf32>
    %81 = arith.addf %79, %80 : vector<1x128xf32>
    %82 = arith.mulf %49, %72 : vector<1x128xf32>
    %83 = arith.addf %81, %82 : vector<1x128xf32>
    %84 = math.absf %83 : vector<1x128xf32>
    %cst_28 = arith.constant 9.99999968E-21 : f32
    %85 = vector.broadcast %cst_28 : f32 to vector<1x128xf32>
    %86 = arith.cmpf olt, %84, %85 : vector<1x128xf32>
    %cst_29 = arith.constant 9.99999968E-21 : f32
    %87 = vector.broadcast %cst_29 : f32 to vector<1x128xf32>
    %88 = arith.select %86, %87, %83 : vector<1x128xi1>, vector<1x128xf32>
    %cst_30 = arith.constant 1.000000e+00 : f32
    %89 = vector.broadcast %cst_30 : f32 to vector<1x128xf32>
    %90 = arith.divf %89, %88 : vector<1x128xf32>
    %91 = tpu.concatenate %54, %57, %60, %63, %66, %69, %72, %75, %78 in 0 : vector<1x128xf32>, vector<1x128xf32>, vector<1x128xf32>, vector<1x128xf32>, vector<1x128xf32>, vector<1x128xf32>, vector<1x128xf32>, vector<1x128xf32>, vector<1x128xf32> -> vector<9x128xf32>
    %92 = vector.broadcast %90 : vector<1x128xf32> to vector<9x128xf32>
    %93 = arith.mulf %91, %92 : vector<9x128xf32>
    %cst_31 = arith.constant dense<0.000000e+00> : vector<32x128xf32>
    %94 = tpu.matmul %0, %11, %cst_31 {dimension_numbers = #tpu.dot_dimension_numbers<[1], [0], [0], [1], [0, 0, 1, 1], [], []>} : vector<32x3xf32>, vector<3x128xf32>, vector<32x128xf32> -> vector<32x128xf32>
    %95 = vector.broadcast %1 : vector<32x1xf32> to vector<32x128xf32>
    %96 = arith.addf %94, %95 : vector<32x128xf32>
    %cst_32 = arith.constant 0.000000e+00 : f32
    %97 = vector.broadcast %cst_32 : f32 to vector<32x128xf32>
    %98 = arith.maximumf %96, %97 : vector<32x128xf32>
    %cst_33 = arith.constant dense<0.000000e+00> : vector<32x128xf32>
    %99 = tpu.matmul %2, %98, %cst_33 {dimension_numbers = #tpu.dot_dimension_numbers<[1], [0], [0], [1], [0, 0, 1, 1], [], []>} : vector<32x32xf32>, vector<32x128xf32>, vector<32x128xf32> -> vector<32x128xf32>
    %100 = vector.broadcast %3 : vector<32x1xf32> to vector<32x128xf32>
    %101 = arith.addf %99, %100 : vector<32x128xf32>
    %cst_34 = arith.constant 0.000000e+00 : f32
    %102 = vector.broadcast %cst_34 : f32 to vector<32x128xf32>
    %103 = arith.maximumf %101, %102 : vector<32x128xf32>
    %cst_35 = arith.constant dense<0.000000e+00> : vector<24x128xf32>
    %104 = tpu.matmul %4, %103, %cst_35 {dimension_numbers = #tpu.dot_dimension_numbers<[1], [0], [0], [1], [0, 0, 1, 1], [], []>} : vector<24x32xf32>, vector<32x128xf32>, vector<24x128xf32> -> vector<24x128xf32>
    %105 = vector.broadcast %5 : vector<24x1xf32> to vector<24x128xf32>
    %106 = arith.addf %104, %105 : vector<24x128xf32>
    %cst_36 = arith.constant 2.000000e+01 : f32
    %107 = vector.broadcast %cst_36 : f32 to vector<24x128xf32>
    %108 = arith.mulf %107, %106 : vector<24x128xf32>
    %cst_37 = arith.constant dense<0xFF800000> : vector<128xf32>
    %109 = vector.multi_reduction <maximumf>, %108, %cst_37 [0] : vector<24x128xf32> to vector<128xf32>
    %110 = vector.shape_cast %109 : vector<128xf32> to vector<1x128xf32>
    %111 = vector.broadcast %110 : vector<1x128xf32> to vector<24x128xf32>
    %112 = arith.subf %108, %111 : vector<24x128xf32>
    %113 = math.exp %112 : vector<24x128xf32>
    %cst_38 = arith.constant dense<0.000000e+00> : vector<128xf32>
    %114 = vector.multi_reduction <add>, %113, %cst_38 [0] : vector<24x128xf32> to vector<128xf32>
    %115 = vector.shape_cast %114 : vector<128xf32> to vector<1x128xf32>
    %116 = vector.broadcast %115 : vector<1x128xf32> to vector<24x128xf32>
    %117 = arith.divf %113, %116 : vector<24x128xf32>
    %cst_39 = arith.constant dense<0.000000e+00> : vector<12x128xf32>
    %118 = tpu.matmul %7, %117, %cst_39 {dimension_numbers = #tpu.dot_dimension_numbers<[1], [0], [0], [1], [0, 0, 1, 1], [], []>} : vector<12x24xf32>, vector<24x128xf32>, vector<12x128xf32> -> vector<12x128xf32>
    %119 = vector.extract_strided_slice %118 {offsets = [0, 0], sizes = [1, 128], strides = [1, 1]} : vector<12x128xf32> to vector<1x128xf32>
    %120 = vector.extract_strided_slice %11 {offsets = [0, 0], sizes = [1, 128], strides = [1, 1]} : vector<3x128xf32> to vector<1x128xf32>
    %121 = arith.mulf %119, %120 : vector<1x128xf32>
    %122 = vector.extract_strided_slice %118 {offsets = [3, 0], sizes = [1, 128], strides = [1, 1]} : vector<12x128xf32> to vector<1x128xf32>
    %123 = vector.extract_strided_slice %11 {offsets = [1, 0], sizes = [1, 128], strides = [1, 1]} : vector<3x128xf32> to vector<1x128xf32>
    %124 = arith.mulf %122, %123 : vector<1x128xf32>
    %125 = arith.addf %121, %124 : vector<1x128xf32>
    %126 = vector.extract_strided_slice %118 {offsets = [6, 0], sizes = [1, 128], strides = [1, 1]} : vector<12x128xf32> to vector<1x128xf32>
    %127 = vector.extract_strided_slice %11 {offsets = [2, 0], sizes = [1, 128], strides = [1, 1]} : vector<3x128xf32> to vector<1x128xf32>
    %128 = arith.mulf %126, %127 : vector<1x128xf32>
    %129 = arith.addf %125, %128 : vector<1x128xf32>
    %130 = vector.extract_strided_slice %118 {offsets = [9, 0], sizes = [1, 128], strides = [1, 1]} : vector<12x128xf32> to vector<1x128xf32>
    %131 = arith.addf %129, %130 : vector<1x128xf32>
    %132 = vector.extract_strided_slice %118 {offsets = [1, 0], sizes = [1, 128], strides = [1, 1]} : vector<12x128xf32> to vector<1x128xf32>
    %133 = vector.extract_strided_slice %11 {offsets = [0, 0], sizes = [1, 128], strides = [1, 1]} : vector<3x128xf32> to vector<1x128xf32>
    %134 = arith.mulf %132, %133 : vector<1x128xf32>
    %135 = vector.extract_strided_slice %118 {offsets = [4, 0], sizes = [1, 128], strides = [1, 1]} : vector<12x128xf32> to vector<1x128xf32>
    %136 = vector.extract_strided_slice %11 {offsets = [1, 0], sizes = [1, 128], strides = [1, 1]} : vector<3x128xf32> to vector<1x128xf32>
    %137 = arith.mulf %135, %136 : vector<1x128xf32>
    %138 = arith.addf %134, %137 : vector<1x128xf32>
    %139 = vector.extract_strided_slice %118 {offsets = [7, 0], sizes = [1, 128], strides = [1, 1]} : vector<12x128xf32> to vector<1x128xf32>
    %140 = vector.extract_strided_slice %11 {offsets = [2, 0], sizes = [1, 128], strides = [1, 1]} : vector<3x128xf32> to vector<1x128xf32>
    %141 = arith.mulf %139, %140 : vector<1x128xf32>
    %142 = arith.addf %138, %141 : vector<1x128xf32>
    %143 = vector.extract_strided_slice %118 {offsets = [10, 0], sizes = [1, 128], strides = [1, 1]} : vector<12x128xf32> to vector<1x128xf32>
    %144 = arith.addf %142, %143 : vector<1x128xf32>
    %145 = vector.extract_strided_slice %118 {offsets = [2, 0], sizes = [1, 128], strides = [1, 1]} : vector<12x128xf32> to vector<1x128xf32>
    %146 = vector.extract_strided_slice %11 {offsets = [0, 0], sizes = [1, 128], strides = [1, 1]} : vector<3x128xf32> to vector<1x128xf32>
    %147 = arith.mulf %145, %146 : vector<1x128xf32>
    %148 = vector.extract_strided_slice %118 {offsets = [5, 0], sizes = [1, 128], strides = [1, 1]} : vector<12x128xf32> to vector<1x128xf32>
    %149 = vector.extract_strided_slice %11 {offsets = [1, 0], sizes = [1, 128], strides = [1, 1]} : vector<3x128xf32> to vector<1x128xf32>
    %150 = arith.mulf %148, %149 : vector<1x128xf32>
    %151 = arith.addf %147, %150 : vector<1x128xf32>
    %152 = vector.extract_strided_slice %118 {offsets = [8, 0], sizes = [1, 128], strides = [1, 1]} : vector<12x128xf32> to vector<1x128xf32>
    %153 = vector.extract_strided_slice %11 {offsets = [2, 0], sizes = [1, 128], strides = [1, 1]} : vector<3x128xf32> to vector<1x128xf32>
    %154 = arith.mulf %152, %153 : vector<1x128xf32>
    %155 = arith.addf %151, %154 : vector<1x128xf32>
    %156 = vector.extract_strided_slice %118 {offsets = [11, 0], sizes = [1, 128], strides = [1, 1]} : vector<12x128xf32> to vector<1x128xf32>
    %157 = arith.addf %155, %156 : vector<1x128xf32>
    %158 = tpu.concatenate %131, %144, %157 in 0 : vector<1x128xf32>, vector<1x128xf32>, vector<1x128xf32> -> vector<3x128xf32>
    %159 = arith.subf %158, %9 : vector<3x128xf32>
    %160 = vector.extract_strided_slice %93 {offsets = [0, 0], sizes = [1, 128], strides = [1, 1]} : vector<9x128xf32> to vector<1x128xf32>
    %161 = vector.extract_strided_slice %159 {offsets = [0, 0], sizes = [1, 128], strides = [1, 1]} : vector<3x128xf32> to vector<1x128xf32>
    %162 = arith.mulf %160, %161 : vector<1x128xf32>
    %163 = vector.extract_strided_slice %93 {offsets = [1, 0], sizes = [1, 128], strides = [1, 1]} : vector<9x128xf32> to vector<1x128xf32>
    %164 = vector.extract_strided_slice %159 {offsets = [1, 0], sizes = [1, 128], strides = [1, 1]} : vector<3x128xf32> to vector<1x128xf32>
    %165 = arith.mulf %163, %164 : vector<1x128xf32>
    %166 = arith.addf %162, %165 : vector<1x128xf32>
    %167 = vector.extract_strided_slice %93 {offsets = [2, 0], sizes = [1, 128], strides = [1, 1]} : vector<9x128xf32> to vector<1x128xf32>
    %168 = vector.extract_strided_slice %159 {offsets = [2, 0], sizes = [1, 128], strides = [1, 1]} : vector<3x128xf32> to vector<1x128xf32>
    %169 = arith.mulf %167, %168 : vector<1x128xf32>
    %170 = arith.addf %166, %169 : vector<1x128xf32>
    %171 = vector.extract_strided_slice %93 {offsets = [3, 0], sizes = [1, 128], strides = [1, 1]} : vector<9x128xf32> to vector<1x128xf32>
    %172 = vector.extract_strided_slice %159 {offsets = [0, 0], sizes = [1, 128], strides = [1, 1]} : vector<3x128xf32> to vector<1x128xf32>
    %173 = arith.mulf %171, %172 : vector<1x128xf32>
    %174 = vector.extract_strided_slice %93 {offsets = [4, 0], sizes = [1, 128], strides = [1, 1]} : vector<9x128xf32> to vector<1x128xf32>
    %175 = vector.extract_strided_slice %159 {offsets = [1, 0], sizes = [1, 128], strides = [1, 1]} : vector<3x128xf32> to vector<1x128xf32>
    %176 = arith.mulf %174, %175 : vector<1x128xf32>
    %177 = arith.addf %173, %176 : vector<1x128xf32>
    %178 = vector.extract_strided_slice %93 {offsets = [5, 0], sizes = [1, 128], strides = [1, 1]} : vector<9x128xf32> to vector<1x128xf32>
    %179 = vector.extract_strided_slice %159 {offsets = [2, 0], sizes = [1, 128], strides = [1, 1]} : vector<3x128xf32> to vector<1x128xf32>
    %180 = arith.mulf %178, %179 : vector<1x128xf32>
    %181 = arith.addf %177, %180 : vector<1x128xf32>
    %182 = vector.extract_strided_slice %93 {offsets = [6, 0], sizes = [1, 128], strides = [1, 1]} : vector<9x128xf32> to vector<1x128xf32>
    %183 = vector.extract_strided_slice %159 {offsets = [0, 0], sizes = [1, 128], strides = [1, 1]} : vector<3x128xf32> to vector<1x128xf32>
    %184 = arith.mulf %182, %183 : vector<1x128xf32>
    %185 = vector.extract_strided_slice %93 {offsets = [7, 0], sizes = [1, 128], strides = [1, 1]} : vector<9x128xf32> to vector<1x128xf32>
    %186 = vector.extract_strided_slice %159 {offsets = [1, 0], sizes = [1, 128], strides = [1, 1]} : vector<3x128xf32> to vector<1x128xf32>
    %187 = arith.mulf %185, %186 : vector<1x128xf32>
    %188 = arith.addf %184, %187 : vector<1x128xf32>
    %189 = vector.extract_strided_slice %93 {offsets = [8, 0], sizes = [1, 128], strides = [1, 1]} : vector<9x128xf32> to vector<1x128xf32>
    %190 = vector.extract_strided_slice %159 {offsets = [2, 0], sizes = [1, 128], strides = [1, 1]} : vector<3x128xf32> to vector<1x128xf32>
    %191 = arith.mulf %189, %190 : vector<1x128xf32>
    %192 = arith.addf %188, %191 : vector<1x128xf32>
    %193 = tpu.concatenate %170, %181, %192 in 0 : vector<1x128xf32>, vector<1x128xf32>, vector<1x128xf32> -> vector<3x128xf32>
    %cst_40 = arith.constant 0.000000e+00 : f32
    %194 = vector.broadcast %cst_40 : f32 to vector<3x128xf32>
    %195 = arith.subf %194, %193 : vector<3x128xf32>
    %196 = arith.mulf %159, %159 : vector<3x128xf32>
    %cst_41 = arith.constant dense<0.000000e+00> : vector<128xf32>
    %197 = vector.multi_reduction <add>, %196, %cst_41 [0] : vector<3x128xf32> to vector<128xf32>
    %198 = vector.shape_cast %197 : vector<128xf32> to vector<1x128xf32>
    %199 = math.sqrt %198 : vector<1x128xf32>
    %cst_42 = arith.constant 0.000000e+00 : f32
    %200 = vector.broadcast %cst_42 : f32 to vector<3x128xf32>
    %201 = arith.extui %17 : vector<1x128xi1> to vector<1x128xi32>
    %202 = arith.sitofp %201 : vector<1x128xi32> to vector<1x128xf32>
    %203 = vector.shape_cast %202 : vector<1x128xf32> to vector<1x1x128xf32>
    %cst_43 = arith.constant dense<0.000000e+00> : vector<1xf32>
    %204 = vector.multi_reduction <add>, %203, %cst_43 [1, 2] : vector<1x1x128xf32> to vector<1xf32>
    %205 = vector.shape_cast %204 : vector<1xf32> to vector<1x1x1xf32>
    %206 = vector.extract %205[0, 0, 0] : f32 from vector<1x1x1xf32>
    %c0_i32 = arith.constant 0 : i32
    %207:10 = scf.while (%arg13 = %c0_i32, %arg14 = %206, %arg15 = %11, %arg16 = %159, %arg17 = %93, %arg18 = %195, %arg19 = %200, %arg20 = %200, %arg21 = %199, %arg22 = %202) : (i32, f32, vector<3x128xf32>, vector<3x128xf32>, vector<9x128xf32>, vector<3x128xf32>, vector<3x128xf32>, vector<3x128xf32>, vector<1x128xf32>, vector<1x128xf32>) -> (i32, f32, vector<3x128xf32>, vector<3x128xf32>, vector<9x128xf32>, vector<3x128xf32>, vector<3x128xf32>, vector<3x128xf32>, vector<1x128xf32>, vector<1x128xf32>) {
      %c50_i32 = arith.constant 50 : i32
      %214 = arith.cmpi slt, %arg13, %c50_i32 : i32
      %cst_50 = arith.constant 5.000000e-01 : f32
      %215 = arith.cmpf ogt, %arg14, %cst_50 : f32
      %216 = arith.andi %214, %215 : i1
      scf.condition(%216) %arg13, %arg14, %arg15, %arg16, %arg17, %arg18, %arg19, %arg20, %arg21, %arg22 : i32, f32, vector<3x128xf32>, vector<3x128xf32>, vector<9x128xf32>, vector<3x128xf32>, vector<3x128xf32>, vector<3x128xf32>, vector<1x128xf32>, vector<1x128xf32>
    } do {
    ^bb0(%arg13: i32, %arg14: f32, %arg15: vector<3x128xf32>, %arg16: vector<3x128xf32>, %arg17: vector<9x128xf32>, %arg18: vector<3x128xf32>, %arg19: vector<3x128xf32>, %arg20: vector<3x128xf32>, %arg21: vector<1x128xf32>, %arg22: vector<1x128xf32>):
      %cst_50 = arith.constant 5.000000e-01 : f32
      %214 = vector.broadcast %cst_50 : f32 to vector<1x128xf32>
      %215 = arith.cmpf ogt, %arg22, %214 : vector<1x128xf32>
      %216 = vector.shape_cast %215 : vector<1x128xi1> to vector<1x128xi1>
      %217 = vector.broadcast %216 : vector<1x128xi1> to vector<3x128xi1>
      %218 = arith.select %217, %arg18, %arg19 : vector<3x128xi1>, vector<3x128xf32>
      %219 = arith.addf %arg15, %218 : vector<3x128xf32>
      %220 = vector.shape_cast %215 : vector<1x128xi1> to vector<1x128xi1>
      %221 = vector.broadcast %220 : vector<1x128xi1> to vector<3x128xi1>
      %222 = arith.select %221, %219, %arg15 : vector<3x128xi1>, vector<3x128xf32>
      %cst_51 = arith.constant dense<0.000000e+00> : vector<32x128xf32>
      %223 = tpu.matmul %0, %222, %cst_51 {dimension_numbers = #tpu.dot_dimension_numbers<[1], [0], [0], [1], [0, 0, 1, 1], [], []>} : vector<32x3xf32>, vector<3x128xf32>, vector<32x128xf32> -> vector<32x128xf32>
      %224 = vector.broadcast %1 : vector<32x1xf32> to vector<32x128xf32>
      %225 = arith.addf %223, %224 : vector<32x128xf32>
      %cst_52 = arith.constant 0.000000e+00 : f32
      %226 = vector.broadcast %cst_52 : f32 to vector<32x128xf32>
      %227 = arith.maximumf %225, %226 : vector<32x128xf32>
      %cst_53 = arith.constant dense<0.000000e+00> : vector<32x128xf32>
      %228 = tpu.matmul %2, %227, %cst_53 {dimension_numbers = #tpu.dot_dimension_numbers<[1], [0], [0], [1], [0, 0, 1, 1], [], []>} : vector<32x32xf32>, vector<32x128xf32>, vector<32x128xf32> -> vector<32x128xf32>
      %229 = vector.broadcast %3 : vector<32x1xf32> to vector<32x128xf32>
      %230 = arith.addf %228, %229 : vector<32x128xf32>
      %cst_54 = arith.constant 0.000000e+00 : f32
      %231 = vector.broadcast %cst_54 : f32 to vector<32x128xf32>
      %232 = arith.maximumf %230, %231 : vector<32x128xf32>
      %cst_55 = arith.constant dense<0.000000e+00> : vector<24x128xf32>
      %233 = tpu.matmul %4, %232, %cst_55 {dimension_numbers = #tpu.dot_dimension_numbers<[1], [0], [0], [1], [0, 0, 1, 1], [], []>} : vector<24x32xf32>, vector<32x128xf32>, vector<24x128xf32> -> vector<24x128xf32>
      %234 = vector.broadcast %5 : vector<24x1xf32> to vector<24x128xf32>
      %235 = arith.addf %233, %234 : vector<24x128xf32>
      %cst_56 = arith.constant 2.000000e+01 : f32
      %236 = vector.broadcast %cst_56 : f32 to vector<24x128xf32>
      %237 = arith.mulf %236, %235 : vector<24x128xf32>
      %cst_57 = arith.constant dense<0xFF800000> : vector<128xf32>
      %238 = vector.multi_reduction <maximumf>, %237, %cst_57 [0] : vector<24x128xf32> to vector<128xf32>
      %239 = vector.shape_cast %238 : vector<128xf32> to vector<1x128xf32>
      %240 = vector.broadcast %239 : vector<1x128xf32> to vector<24x128xf32>
      %241 = arith.subf %237, %240 : vector<24x128xf32>
      %242 = math.exp %241 : vector<24x128xf32>
      %cst_58 = arith.constant dense<0.000000e+00> : vector<128xf32>
      %243 = vector.multi_reduction <add>, %242, %cst_58 [0] : vector<24x128xf32> to vector<128xf32>
      %244 = vector.shape_cast %243 : vector<128xf32> to vector<1x128xf32>
      %245 = vector.broadcast %244 : vector<1x128xf32> to vector<24x128xf32>
      %246 = arith.divf %242, %245 : vector<24x128xf32>
      %cst_59 = arith.constant dense<0.000000e+00> : vector<12x128xf32>
      %247 = tpu.matmul %7, %246, %cst_59 {dimension_numbers = #tpu.dot_dimension_numbers<[1], [0], [0], [1], [0, 0, 1, 1], [], []>} : vector<12x24xf32>, vector<24x128xf32>, vector<12x128xf32> -> vector<12x128xf32>
      %248 = vector.extract_strided_slice %247 {offsets = [0, 0], sizes = [1, 128], strides = [1, 1]} : vector<12x128xf32> to vector<1x128xf32>
      %249 = vector.extract_strided_slice %222 {offsets = [0, 0], sizes = [1, 128], strides = [1, 1]} : vector<3x128xf32> to vector<1x128xf32>
      %250 = arith.mulf %248, %249 : vector<1x128xf32>
      %251 = vector.extract_strided_slice %247 {offsets = [3, 0], sizes = [1, 128], strides = [1, 1]} : vector<12x128xf32> to vector<1x128xf32>
      %252 = vector.extract_strided_slice %222 {offsets = [1, 0], sizes = [1, 128], strides = [1, 1]} : vector<3x128xf32> to vector<1x128xf32>
      %253 = arith.mulf %251, %252 : vector<1x128xf32>
      %254 = arith.addf %250, %253 : vector<1x128xf32>
      %255 = vector.extract_strided_slice %247 {offsets = [6, 0], sizes = [1, 128], strides = [1, 1]} : vector<12x128xf32> to vector<1x128xf32>
      %256 = vector.extract_strided_slice %222 {offsets = [2, 0], sizes = [1, 128], strides = [1, 1]} : vector<3x128xf32> to vector<1x128xf32>
      %257 = arith.mulf %255, %256 : vector<1x128xf32>
      %258 = arith.addf %254, %257 : vector<1x128xf32>
      %259 = vector.extract_strided_slice %247 {offsets = [9, 0], sizes = [1, 128], strides = [1, 1]} : vector<12x128xf32> to vector<1x128xf32>
      %260 = arith.addf %258, %259 : vector<1x128xf32>
      %261 = vector.extract_strided_slice %247 {offsets = [1, 0], sizes = [1, 128], strides = [1, 1]} : vector<12x128xf32> to vector<1x128xf32>
      %262 = vector.extract_strided_slice %222 {offsets = [0, 0], sizes = [1, 128], strides = [1, 1]} : vector<3x128xf32> to vector<1x128xf32>
      %263 = arith.mulf %261, %262 : vector<1x128xf32>
      %264 = vector.extract_strided_slice %247 {offsets = [4, 0], sizes = [1, 128], strides = [1, 1]} : vector<12x128xf32> to vector<1x128xf32>
      %265 = vector.extract_strided_slice %222 {offsets = [1, 0], sizes = [1, 128], strides = [1, 1]} : vector<3x128xf32> to vector<1x128xf32>
      %266 = arith.mulf %264, %265 : vector<1x128xf32>
      %267 = arith.addf %263, %266 : vector<1x128xf32>
      %268 = vector.extract_strided_slice %247 {offsets = [7, 0], sizes = [1, 128], strides = [1, 1]} : vector<12x128xf32> to vector<1x128xf32>
      %269 = vector.extract_strided_slice %222 {offsets = [2, 0], sizes = [1, 128], strides = [1, 1]} : vector<3x128xf32> to vector<1x128xf32>
      %270 = arith.mulf %268, %269 : vector<1x128xf32>
      %271 = arith.addf %267, %270 : vector<1x128xf32>
      %272 = vector.extract_strided_slice %247 {offsets = [10, 0], sizes = [1, 128], strides = [1, 1]} : vector<12x128xf32> to vector<1x128xf32>
      %273 = arith.addf %271, %272 : vector<1x128xf32>
      %274 = vector.extract_strided_slice %247 {offsets = [2, 0], sizes = [1, 128], strides = [1, 1]} : vector<12x128xf32> to vector<1x128xf32>
      %275 = vector.extract_strided_slice %222 {offsets = [0, 0], sizes = [1, 128], strides = [1, 1]} : vector<3x128xf32> to vector<1x128xf32>
      %276 = arith.mulf %274, %275 : vector<1x128xf32>
      %277 = vector.extract_strided_slice %247 {offsets = [5, 0], sizes = [1, 128], strides = [1, 1]} : vector<12x128xf32> to vector<1x128xf32>
      %278 = vector.extract_strided_slice %222 {offsets = [1, 0], sizes = [1, 128], strides = [1, 1]} : vector<3x128xf32> to vector<1x128xf32>
      %279 = arith.mulf %277, %278 : vector<1x128xf32>
      %280 = arith.addf %276, %279 : vector<1x128xf32>
      %281 = vector.extract_strided_slice %247 {offsets = [8, 0], sizes = [1, 128], strides = [1, 1]} : vector<12x128xf32> to vector<1x128xf32>
      %282 = vector.extract_strided_slice %222 {offsets = [2, 0], sizes = [1, 128], strides = [1, 1]} : vector<3x128xf32> to vector<1x128xf32>
      %283 = arith.mulf %281, %282 : vector<1x128xf32>
      %284 = arith.addf %280, %283 : vector<1x128xf32>
      %285 = vector.extract_strided_slice %247 {offsets = [11, 0], sizes = [1, 128], strides = [1, 1]} : vector<12x128xf32> to vector<1x128xf32>
      %286 = arith.addf %284, %285 : vector<1x128xf32>
      %287 = tpu.concatenate %260, %273, %286 in 0 : vector<1x128xf32>, vector<1x128xf32>, vector<1x128xf32> -> vector<3x128xf32>
      %288 = arith.subf %287, %9 : vector<3x128xf32>
      %289 = arith.subf %288, %arg16 : vector<3x128xf32>
      %290 = vector.shape_cast %215 : vector<1x128xi1> to vector<1x128xi1>
      %291 = vector.broadcast %290 : vector<1x128xi1> to vector<3x128xi1>
      %292 = arith.select %291, %289, %arg20 : vector<3x128xi1>, vector<3x128xf32>
      %293 = arith.addf %arg16, %292 : vector<3x128xf32>
      %294 = vector.shape_cast %215 : vector<1x128xi1> to vector<1x128xi1>
      %295 = vector.broadcast %294 : vector<1x128xi1> to vector<3x128xi1>
      %296 = arith.select %295, %293, %arg16 : vector<3x128xi1>, vector<3x128xf32>
      %297 = arith.mulf %296, %296 : vector<3x128xf32>
      %cst_60 = arith.constant dense<0.000000e+00> : vector<128xf32>
      %298 = vector.multi_reduction <add>, %297, %cst_60 [0] : vector<3x128xf32> to vector<128xf32>
      %299 = vector.shape_cast %298 : vector<128xf32> to vector<1x128xf32>
      %300 = math.sqrt %299 : vector<1x128xf32>
      %301 = arith.minimumf %300, %arg21 : vector<1x128xf32>
      %cst_61 = arith.constant 9.99999974E-6 : f32
      %302 = vector.broadcast %cst_61 : f32 to vector<1x128xf32>
      %303 = arith.cmpf ogt, %301, %302 : vector<1x128xf32>
      %304 = arith.andi %17, %303 : vector<1x128xi1>
      %cst_62 = arith.constant 1.000000e+00 : f32
      %305 = vector.broadcast %cst_62 : f32 to vector<1x128xf32>
      %306 = arith.cmpf olt, %300, %305 : vector<1x128xf32>
      %307 = arith.andi %304, %306 : vector<1x128xi1>
      %308 = vector.extract_strided_slice %218 {offsets = [0, 0], sizes = [1, 128], strides = [1, 1]} : vector<3x128xf32> to vector<1x128xf32>
      %309 = vector.extract_strided_slice %arg17 {offsets = [0, 0], sizes = [1, 128], strides = [1, 1]} : vector<9x128xf32> to vector<1x128xf32>
      %310 = arith.mulf %308, %309 : vector<1x128xf32>
      %311 = vector.extract_strided_slice %218 {offsets = [1, 0], sizes = [1, 128], strides = [1, 1]} : vector<3x128xf32> to vector<1x128xf32>
      %312 = vector.extract_strided_slice %arg17 {offsets = [3, 0], sizes = [1, 128], strides = [1, 1]} : vector<9x128xf32> to vector<1x128xf32>
      %313 = arith.mulf %311, %312 : vector<1x128xf32>
      %314 = arith.addf %310, %313 : vector<1x128xf32>
      %315 = vector.extract_strided_slice %218 {offsets = [2, 0], sizes = [1, 128], strides = [1, 1]} : vector<3x128xf32> to vector<1x128xf32>
      %316 = vector.extract_strided_slice %arg17 {offsets = [6, 0], sizes = [1, 128], strides = [1, 1]} : vector<9x128xf32> to vector<1x128xf32>
      %317 = arith.mulf %315, %316 : vector<1x128xf32>
      %318 = arith.addf %314, %317 : vector<1x128xf32>
      %319 = vector.extract_strided_slice %218 {offsets = [0, 0], sizes = [1, 128], strides = [1, 1]} : vector<3x128xf32> to vector<1x128xf32>
      %320 = vector.extract_strided_slice %arg17 {offsets = [1, 0], sizes = [1, 128], strides = [1, 1]} : vector<9x128xf32> to vector<1x128xf32>
      %321 = arith.mulf %319, %320 : vector<1x128xf32>
      %322 = vector.extract_strided_slice %218 {offsets = [1, 0], sizes = [1, 128], strides = [1, 1]} : vector<3x128xf32> to vector<1x128xf32>
      %323 = vector.extract_strided_slice %arg17 {offsets = [4, 0], sizes = [1, 128], strides = [1, 1]} : vector<9x128xf32> to vector<1x128xf32>
      %324 = arith.mulf %322, %323 : vector<1x128xf32>
      %325 = arith.addf %321, %324 : vector<1x128xf32>
      %326 = vector.extract_strided_slice %218 {offsets = [2, 0], sizes = [1, 128], strides = [1, 1]} : vector<3x128xf32> to vector<1x128xf32>
      %327 = vector.extract_strided_slice %arg17 {offsets = [7, 0], sizes = [1, 128], strides = [1, 1]} : vector<9x128xf32> to vector<1x128xf32>
      %328 = arith.mulf %326, %327 : vector<1x128xf32>
      %329 = arith.addf %325, %328 : vector<1x128xf32>
      %330 = vector.extract_strided_slice %218 {offsets = [0, 0], sizes = [1, 128], strides = [1, 1]} : vector<3x128xf32> to vector<1x128xf32>
      %331 = vector.extract_strided_slice %arg17 {offsets = [2, 0], sizes = [1, 128], strides = [1, 1]} : vector<9x128xf32> to vector<1x128xf32>
      %332 = arith.mulf %330, %331 : vector<1x128xf32>
      %333 = vector.extract_strided_slice %218 {offsets = [1, 0], sizes = [1, 128], strides = [1, 1]} : vector<3x128xf32> to vector<1x128xf32>
      %334 = vector.extract_strided_slice %arg17 {offsets = [5, 0], sizes = [1, 128], strides = [1, 1]} : vector<9x128xf32> to vector<1x128xf32>
      %335 = arith.mulf %333, %334 : vector<1x128xf32>
      %336 = arith.addf %332, %335 : vector<1x128xf32>
      %337 = vector.extract_strided_slice %218 {offsets = [2, 0], sizes = [1, 128], strides = [1, 1]} : vector<3x128xf32> to vector<1x128xf32>
      %338 = vector.extract_strided_slice %arg17 {offsets = [8, 0], sizes = [1, 128], strides = [1, 1]} : vector<9x128xf32> to vector<1x128xf32>
      %339 = arith.mulf %337, %338 : vector<1x128xf32>
      %340 = arith.addf %336, %339 : vector<1x128xf32>
      %341 = tpu.concatenate %318, %329, %340 in 0 : vector<1x128xf32>, vector<1x128xf32>, vector<1x128xf32> -> vector<3x128xf32>
      %342 = vector.extract_strided_slice %arg17 {offsets = [0, 0], sizes = [1, 128], strides = [1, 1]} : vector<9x128xf32> to vector<1x128xf32>
      %343 = vector.extract_strided_slice %292 {offsets = [0, 0], sizes = [1, 128], strides = [1, 1]} : vector<3x128xf32> to vector<1x128xf32>
      %344 = arith.mulf %342, %343 : vector<1x128xf32>
      %345 = vector.extract_strided_slice %arg17 {offsets = [1, 0], sizes = [1, 128], strides = [1, 1]} : vector<9x128xf32> to vector<1x128xf32>
      %346 = vector.extract_strided_slice %292 {offsets = [1, 0], sizes = [1, 128], strides = [1, 1]} : vector<3x128xf32> to vector<1x128xf32>
      %347 = arith.mulf %345, %346 : vector<1x128xf32>
      %348 = arith.addf %344, %347 : vector<1x128xf32>
      %349 = vector.extract_strided_slice %arg17 {offsets = [2, 0], sizes = [1, 128], strides = [1, 1]} : vector<9x128xf32> to vector<1x128xf32>
      %350 = vector.extract_strided_slice %292 {offsets = [2, 0], sizes = [1, 128], strides = [1, 1]} : vector<3x128xf32> to vector<1x128xf32>
      %351 = arith.mulf %349, %350 : vector<1x128xf32>
      %352 = arith.addf %348, %351 : vector<1x128xf32>
      %353 = vector.extract_strided_slice %arg17 {offsets = [3, 0], sizes = [1, 128], strides = [1, 1]} : vector<9x128xf32> to vector<1x128xf32>
      %354 = vector.extract_strided_slice %292 {offsets = [0, 0], sizes = [1, 128], strides = [1, 1]} : vector<3x128xf32> to vector<1x128xf32>
      %355 = arith.mulf %353, %354 : vector<1x128xf32>
      %356 = vector.extract_strided_slice %arg17 {offsets = [4, 0], sizes = [1, 128], strides = [1, 1]} : vector<9x128xf32> to vector<1x128xf32>
      %357 = vector.extract_strided_slice %292 {offsets = [1, 0], sizes = [1, 128], strides = [1, 1]} : vector<3x128xf32> to vector<1x128xf32>
      %358 = arith.mulf %356, %357 : vector<1x128xf32>
      %359 = arith.addf %355, %358 : vector<1x128xf32>
      %360 = vector.extract_strided_slice %arg17 {offsets = [5, 0], sizes = [1, 128], strides = [1, 1]} : vector<9x128xf32> to vector<1x128xf32>
      %361 = vector.extract_strided_slice %292 {offsets = [2, 0], sizes = [1, 128], strides = [1, 1]} : vector<3x128xf32> to vector<1x128xf32>
      %362 = arith.mulf %360, %361 : vector<1x128xf32>
      %363 = arith.addf %359, %362 : vector<1x128xf32>
      %364 = vector.extract_strided_slice %arg17 {offsets = [6, 0], sizes = [1, 128], strides = [1, 1]} : vector<9x128xf32> to vector<1x128xf32>
      %365 = vector.extract_strided_slice %292 {offsets = [0, 0], sizes = [1, 128], strides = [1, 1]} : vector<3x128xf32> to vector<1x128xf32>
      %366 = arith.mulf %364, %365 : vector<1x128xf32>
      %367 = vector.extract_strided_slice %arg17 {offsets = [7, 0], sizes = [1, 128], strides = [1, 1]} : vector<9x128xf32> to vector<1x128xf32>
      %368 = vector.extract_strided_slice %292 {offsets = [1, 0], sizes = [1, 128], strides = [1, 1]} : vector<3x128xf32> to vector<1x128xf32>
      %369 = arith.mulf %367, %368 : vector<1x128xf32>
      %370 = arith.addf %366, %369 : vector<1x128xf32>
      %371 = vector.extract_strided_slice %arg17 {offsets = [8, 0], sizes = [1, 128], strides = [1, 1]} : vector<9x128xf32> to vector<1x128xf32>
      %372 = vector.extract_strided_slice %292 {offsets = [2, 0], sizes = [1, 128], strides = [1, 1]} : vector<3x128xf32> to vector<1x128xf32>
      %373 = arith.mulf %371, %372 : vector<1x128xf32>
      %374 = arith.addf %370, %373 : vector<1x128xf32>
      %375 = tpu.concatenate %352, %363, %374 in 0 : vector<1x128xf32>, vector<1x128xf32>, vector<1x128xf32> -> vector<3x128xf32>
      %376 = arith.subf %218, %375 : vector<3x128xf32>
      %377 = arith.mulf %341, %292 : vector<3x128xf32>
      %cst_63 = arith.constant dense<0.000000e+00> : vector<128xf32>
      %378 = vector.multi_reduction <add>, %377, %cst_63 [0] : vector<3x128xf32> to vector<128xf32>
      %379 = vector.shape_cast %378 : vector<128xf32> to vector<1x128xf32>
      %cst_64 = arith.constant 0.000000e+00 : f32
      %380 = vector.broadcast %cst_64 : f32 to vector<1x128xf32>
      %381 = arith.cmpf oge, %379, %380 : vector<1x128xf32>
      %cst_65 = arith.constant 9.99999997E-7 : f32
      %382 = vector.broadcast %cst_65 : f32 to vector<1x128xf32>
      %383 = arith.addf %379, %382 : vector<1x128xf32>
      %cst_66 = arith.constant 9.99999997E-7 : f32
      %384 = vector.broadcast %cst_66 : f32 to vector<1x128xf32>
      %385 = arith.subf %379, %384 : vector<1x128xf32>
      %386 = arith.select %381, %383, %385 : vector<1x128xi1>, vector<1x128xf32>
      %387 = vector.broadcast %386 : vector<1x128xf32> to vector<3x128xf32>
      %388 = arith.divf %376, %387 : vector<3x128xf32>
      %389 = vector.extract_strided_slice %388 {offsets = [0, 0], sizes = [1, 128], strides = [1, 1]} : vector<3x128xf32> to vector<1x128xf32>
      %390 = vector.extract_strided_slice %341 {offsets = [0, 0], sizes = [1, 128], strides = [1, 1]} : vector<3x128xf32> to vector<1x128xf32>
      %391 = arith.mulf %389, %390 : vector<1x128xf32>
      %392 = vector.extract_strided_slice %388 {offsets = [0, 0], sizes = [1, 128], strides = [1, 1]} : vector<3x128xf32> to vector<1x128xf32>
      %393 = vector.extract_strided_slice %341 {offsets = [1, 0], sizes = [1, 128], strides = [1, 1]} : vector<3x128xf32> to vector<1x128xf32>
      %394 = arith.mulf %392, %393 : vector<1x128xf32>
      %395 = vector.extract_strided_slice %388 {offsets = [0, 0], sizes = [1, 128], strides = [1, 1]} : vector<3x128xf32> to vector<1x128xf32>
      %396 = vector.extract_strided_slice %341 {offsets = [2, 0], sizes = [1, 128], strides = [1, 1]} : vector<3x128xf32> to vector<1x128xf32>
      %397 = arith.mulf %395, %396 : vector<1x128xf32>
      %398 = vector.extract_strided_slice %388 {offsets = [1, 0], sizes = [1, 128], strides = [1, 1]} : vector<3x128xf32> to vector<1x128xf32>
      %399 = vector.extract_strided_slice %341 {offsets = [0, 0], sizes = [1, 128], strides = [1, 1]} : vector<3x128xf32> to vector<1x128xf32>
      %400 = arith.mulf %398, %399 : vector<1x128xf32>
      %401 = vector.extract_strided_slice %388 {offsets = [1, 0], sizes = [1, 128], strides = [1, 1]} : vector<3x128xf32> to vector<1x128xf32>
      %402 = vector.extract_strided_slice %341 {offsets = [1, 0], sizes = [1, 128], strides = [1, 1]} : vector<3x128xf32> to vector<1x128xf32>
      %403 = arith.mulf %401, %402 : vector<1x128xf32>
      %404 = vector.extract_strided_slice %388 {offsets = [1, 0], sizes = [1, 128], strides = [1, 1]} : vector<3x128xf32> to vector<1x128xf32>
      %405 = vector.extract_strided_slice %341 {offsets = [2, 0], sizes = [1, 128], strides = [1, 1]} : vector<3x128xf32> to vector<1x128xf32>
      %406 = arith.mulf %404, %405 : vector<1x128xf32>
      %407 = vector.extract_strided_slice %388 {offsets = [2, 0], sizes = [1, 128], strides = [1, 1]} : vector<3x128xf32> to vector<1x128xf32>
      %408 = vector.extract_strided_slice %341 {offsets = [0, 0], sizes = [1, 128], strides = [1, 1]} : vector<3x128xf32> to vector<1x128xf32>
      %409 = arith.mulf %407, %408 : vector<1x128xf32>
      %410 = vector.extract_strided_slice %388 {offsets = [2, 0], sizes = [1, 128], strides = [1, 1]} : vector<3x128xf32> to vector<1x128xf32>
      %411 = vector.extract_strided_slice %341 {offsets = [1, 0], sizes = [1, 128], strides = [1, 1]} : vector<3x128xf32> to vector<1x128xf32>
      %412 = arith.mulf %410, %411 : vector<1x128xf32>
      %413 = vector.extract_strided_slice %388 {offsets = [2, 0], sizes = [1, 128], strides = [1, 1]} : vector<3x128xf32> to vector<1x128xf32>
      %414 = vector.extract_strided_slice %341 {offsets = [2, 0], sizes = [1, 128], strides = [1, 1]} : vector<3x128xf32> to vector<1x128xf32>
      %415 = arith.mulf %413, %414 : vector<1x128xf32>
      %416 = tpu.concatenate %391, %394, %397, %400, %403, %406, %409, %412, %415 in 0 : vector<1x128xf32>, vector<1x128xf32>, vector<1x128xf32>, vector<1x128xf32>, vector<1x128xf32>, vector<1x128xf32>, vector<1x128xf32>, vector<1x128xf32>, vector<1x128xf32> -> vector<9x128xf32>
      %417 = arith.addf %arg17, %416 : vector<9x128xf32>
      %418 = vector.shape_cast %307 : vector<1x128xi1> to vector<1x128xi1>
      %419 = vector.broadcast %418 : vector<1x128xi1> to vector<9x128xi1>
      %420 = arith.select %419, %417, %arg17 : vector<9x128xi1>, vector<9x128xf32>
      %421 = vector.extract_strided_slice %420 {offsets = [0, 0], sizes = [1, 128], strides = [1, 1]} : vector<9x128xf32> to vector<1x128xf32>
      %422 = vector.extract_strided_slice %296 {offsets = [0, 0], sizes = [1, 128], strides = [1, 1]} : vector<3x128xf32> to vector<1x128xf32>
      %423 = arith.mulf %421, %422 : vector<1x128xf32>
      %424 = vector.extract_strided_slice %420 {offsets = [1, 0], sizes = [1, 128], strides = [1, 1]} : vector<9x128xf32> to vector<1x128xf32>
      %425 = vector.extract_strided_slice %296 {offsets = [1, 0], sizes = [1, 128], strides = [1, 1]} : vector<3x128xf32> to vector<1x128xf32>
      %426 = arith.mulf %424, %425 : vector<1x128xf32>
      %427 = arith.addf %423, %426 : vector<1x128xf32>
      %428 = vector.extract_strided_slice %420 {offsets = [2, 0], sizes = [1, 128], strides = [1, 1]} : vector<9x128xf32> to vector<1x128xf32>
      %429 = vector.extract_strided_slice %296 {offsets = [2, 0], sizes = [1, 128], strides = [1, 1]} : vector<3x128xf32> to vector<1x128xf32>
      %430 = arith.mulf %428, %429 : vector<1x128xf32>
      %431 = arith.addf %427, %430 : vector<1x128xf32>
      %432 = vector.extract_strided_slice %420 {offsets = [3, 0], sizes = [1, 128], strides = [1, 1]} : vector<9x128xf32> to vector<1x128xf32>
      %433 = vector.extract_strided_slice %296 {offsets = [0, 0], sizes = [1, 128], strides = [1, 1]} : vector<3x128xf32> to vector<1x128xf32>
      %434 = arith.mulf %432, %433 : vector<1x128xf32>
      %435 = vector.extract_strided_slice %420 {offsets = [4, 0], sizes = [1, 128], strides = [1, 1]} : vector<9x128xf32> to vector<1x128xf32>
      %436 = vector.extract_strided_slice %296 {offsets = [1, 0], sizes = [1, 128], strides = [1, 1]} : vector<3x128xf32> to vector<1x128xf32>
      %437 = arith.mulf %435, %436 : vector<1x128xf32>
      %438 = arith.addf %434, %437 : vector<1x128xf32>
      %439 = vector.extract_strided_slice %420 {offsets = [5, 0], sizes = [1, 128], strides = [1, 1]} : vector<9x128xf32> to vector<1x128xf32>
      %440 = vector.extract_strided_slice %296 {offsets = [2, 0], sizes = [1, 128], strides = [1, 1]} : vector<3x128xf32> to vector<1x128xf32>
      %441 = arith.mulf %439, %440 : vector<1x128xf32>
      %442 = arith.addf %438, %441 : vector<1x128xf32>
      %443 = vector.extract_strided_slice %420 {offsets = [6, 0], sizes = [1, 128], strides = [1, 1]} : vector<9x128xf32> to vector<1x128xf32>
      %444 = vector.extract_strided_slice %296 {offsets = [0, 0], sizes = [1, 128], strides = [1, 1]} : vector<3x128xf32> to vector<1x128xf32>
      %445 = arith.mulf %443, %444 : vector<1x128xf32>
      %446 = vector.extract_strided_slice %420 {offsets = [7, 0], sizes = [1, 128], strides = [1, 1]} : vector<9x128xf32> to vector<1x128xf32>
      %447 = vector.extract_strided_slice %296 {offsets = [1, 0], sizes = [1, 128], strides = [1, 1]} : vector<3x128xf32> to vector<1x128xf32>
      %448 = arith.mulf %446, %447 : vector<1x128xf32>
      %449 = arith.addf %445, %448 : vector<1x128xf32>
      %450 = vector.extract_strided_slice %420 {offsets = [8, 0], sizes = [1, 128], strides = [1, 1]} : vector<9x128xf32> to vector<1x128xf32>
      %451 = vector.extract_strided_slice %296 {offsets = [2, 0], sizes = [1, 128], strides = [1, 1]} : vector<3x128xf32> to vector<1x128xf32>
      %452 = arith.mulf %450, %451 : vector<1x128xf32>
      %453 = arith.addf %449, %452 : vector<1x128xf32>
      %454 = tpu.concatenate %431, %442, %453 in 0 : vector<1x128xf32>, vector<1x128xf32>, vector<1x128xf32> -> vector<3x128xf32>
      %cst_67 = arith.constant 0.000000e+00 : f32
      %455 = vector.broadcast %cst_67 : f32 to vector<3x128xf32>
      %456 = arith.subf %455, %454 : vector<3x128xf32>
      %457 = arith.extui %307 : vector<1x128xi1> to vector<1x128xi32>
      %458 = arith.sitofp %457 : vector<1x128xi32> to vector<1x128xf32>
      %c1_i32 = arith.constant 1 : i32
      %459 = arith.addi %arg13, %c1_i32 : i32
      %460 = vector.shape_cast %458 : vector<1x128xf32> to vector<1x1x128xf32>
      %cst_68 = arith.constant dense<0.000000e+00> : vector<1xf32>
      %461 = vector.multi_reduction <add>, %460, %cst_68 [1, 2] : vector<1x1x128xf32> to vector<1xf32>
      %462 = vector.shape_cast %461 : vector<1xf32> to vector<1x1x1xf32>
      %463 = vector.extract %462[0, 0, 0] : f32 from vector<1x1x1xf32>
      scf.yield %459, %463, %222, %296, %420, %456, %218, %292, %301, %458 : i32, f32, vector<3x128xf32>, vector<3x128xf32>, vector<9x128xf32>, vector<3x128xf32>, vector<3x128xf32>, vector<3x128xf32>, vector<1x128xf32>, vector<1x128xf32>
    }
    %c0_44 = arith.constant 0 : index
    %c0_45 = arith.constant 0 : index
    %c0_46 = arith.constant 0 : index
    %208 = vector.load %arg11[%c0_44, %c0_45, %c0_46] : memref<1x3x128xf32, #tpu.memory_space<vmem>>, vector<1x3x128xf32>
    %209 = vector.shape_cast %208 : vector<1x3x128xf32> to vector<3x128xf32>
    %210 = vector.shape_cast %207#2 : vector<3x128xf32> to vector<1x3x128xf32>
    tpu.vector_store %arg11[%c0_44, %c0_45, %c0_46], %210 {strides = array<i32>} : memref<1x3x128xf32, #tpu.memory_space<vmem>>, vector<1x3x128xf32>,
    %c0_47 = arith.constant 0 : index
    %c0_48 = arith.constant 0 : index
    %c0_49 = arith.constant 0 : index
    %211 = vector.load %arg12[%c0_47, %c0_48, %c0_49] : memref<1x1x128xf32, #tpu.memory_space<vmem>>, vector<1x1x128xf32>
    %212 = vector.shape_cast %211 : vector<1x1x128xf32> to vector<1x128xf32>
    %213 = vector.shape_cast %207#8 : vector<1x128xf32> to vector<1x1x128xf32>
    tpu.vector_store %arg12[%c0_47, %c0_48, %c0_49], %213 {strides = array<i32>} : memref<1x1x128xf32, #tpu.memory_space<vmem>>, vector<1x1x128xf32>,
    return
  }
  func.func @transform_0(%arg0: i32, %arg1: i32) -> (i32, i32, i32) {
    %c0_i32 = arith.constant 0 : i32
    %c0_i32_0 = arith.constant 0 : i32
    return %arg0, %c0_i32, %arg1 : i32, i32, i32
  }
  func.func @transform_1(%arg0: i32, %arg1: i32) -> (i32, i32, i32) {
    %c0_i32 = arith.constant 0 : i32
    %c0_i32_0 = arith.constant 0 : i32
    return %arg0, %c0_i32, %arg1 : i32, i32, i32
  }
  func.func @transform_2(%arg0: i32, %arg1: i32) -> (i32, i32) {
    %c0_i32 = arith.constant 0 : i32
    %c0_i32_0 = arith.constant 0 : i32
    %c0_i32_1 = arith.constant 0 : i32
    return %c0_i32, %c0_i32_0 : i32, i32
  }
  func.func @transform_3(%arg0: i32, %arg1: i32) -> (i32, i32) {
    %c0_i32 = arith.constant 0 : i32
    %c0_i32_0 = arith.constant 0 : i32
    %c0_i32_1 = arith.constant 0 : i32
    return %c0_i32, %c0_i32_0 : i32, i32
  }
  func.func @transform_4(%arg0: i32, %arg1: i32) -> (i32, i32) {
    %c0_i32 = arith.constant 0 : i32
    %c0_i32_0 = arith.constant 0 : i32
    %c0_i32_1 = arith.constant 0 : i32
    return %c0_i32, %c0_i32_0 : i32, i32
  }
  func.func @transform_5(%arg0: i32, %arg1: i32) -> (i32, i32) {
    %c0_i32 = arith.constant 0 : i32
    %c0_i32_0 = arith.constant 0 : i32
    %c0_i32_1 = arith.constant 0 : i32
    return %c0_i32, %c0_i32_0 : i32, i32
  }
  func.func @transform_6(%arg0: i32, %arg1: i32) -> (i32, i32) {
    %c0_i32 = arith.constant 0 : i32
    %c0_i32_0 = arith.constant 0 : i32
    %c0_i32_1 = arith.constant 0 : i32
    return %c0_i32, %c0_i32_0 : i32, i32
  }
  func.func @transform_7(%arg0: i32, %arg1: i32) -> (i32, i32) {
    %c0_i32 = arith.constant 0 : i32
    %c0_i32_0 = arith.constant 0 : i32
    %c0_i32_1 = arith.constant 0 : i32
    return %c0_i32, %c0_i32_0 : i32, i32
  }
  func.func @transform_8(%arg0: i32, %arg1: i32) -> (i32, i32, i32) {
    %c0_i32 = arith.constant 0 : i32
    %c0_i32_0 = arith.constant 0 : i32
    %c0_i32_1 = arith.constant 0 : i32
    return %arg0, %c0_i32, %c0_i32_0 : i32, i32, i32
  }
  func.func @transform_9(%arg0: i32, %arg1: i32) -> (i32, i32, i32) {
    %c0_i32 = arith.constant 0 : i32
    %c0_i32_0 = arith.constant 0 : i32
    return %arg0, %c0_i32, %arg1 : i32, i32, i32
  }
  func.func @transform_10(%arg0: i32, %arg1: i32) -> (i32, i32, i32) {
    %c0_i32 = arith.constant 0 : i32
    %c0_i32_0 = arith.constant 0 : i32
    return %arg0, %c0_i32, %arg1 : i32, i32, i32
  }
}

</mosaic_0001>

<llo_original>
// kernel: squeeze.3
$region0: #{squeeze.3}
  %s0 = inlined_call_operand.vmem [shape: f32[2,72], index: 0, kind: input, shape index: {}]
  %s1 = inlined_call_operand.hbm [shape: f32[144], index: 1, kind: output, shape index: {}]
  $region1: #{squeeze.3} parent=0
    #allocation0 [shape = 'u8[1024]{0}', space=vmem, size = 0x400, scoped, tag = 'operand span for operand 1']
    #allocation1 [shape = 's32[1]{0}', space=sflag, size = 0x4, scoped, tag = 'scoped memory for squeeze.3']
    #allocation2 [shape = 'u8[4096]{0}', space=vmem, size = 0x1000, scoped, tag = 'scoped mem for output reshape']
    #allocation3 [shape = 'u8[4096]{0}', space=vmem, size = 0x1000, scoped, tag = 'scoped mem for input reshape']
    %2 = vsyncpa [#allocation1], 0
    %s4 = ssub.s32 4, 1
    %v5 = vld [vmem:[%s0] sm:%s4]
    %6 = vst [vmem:[#allocation3] sm:%s4] %v5
    %v7 = vld [vmem:[#allocation3] sm:$0x1]
    %vm8 = vcmask 588800
    %9 = vst.msk [vmem:[#allocation2] sm:$0x1] %vm8, %v7
    %s10 = scalar_lea.vmem [#allocation3], 1
    %v11 = vld [vmem:[%s10] sm:$0x1]
    %s12 = scalar_lea.vmem [#allocation3], 1
    %v13 = vld [vmem:[%s12] sm:$0x1]
    %vm14 = vcmask 457728
    %v15 = vsel %vm14, %v13, %v11
    %16 = vrot.lane.b32.xlu0 %v15, 72
    %v17 = vpop.permute.xlu0 %16
    %vm18 = vcmask 130048
    %s19 = scalar_lea.vmem [#allocation2], 1
    %20 = vst.msk [vmem:[%s19] sm:$0x1] %vm18, %v17
    %vm21 = vcmask 1048128
    %22 = vst.msk [vmem:[#allocation2] sm:$0x1] %vm21, %v17
    %s24 = ssub.s32 4, 1
    %v25 = vld [vmem:[#allocation2] sm:%s24]
    %s27 = ssub.s32 4, 1
    %28 = vst [vmem:[#allocation0] sm:%s27] %v25
    %30 = vsyncadd [#allocation1], 0
    %s32 = sshll.u32 [#allocation0], 4
    %s33 = int_to_ptr.vmem [resolvable:$true] %s32
    %s34 = sshll.u32 %s1, 4
    %s35 = int_to_ptr.hbm [resolvable:$true] %s34
    %37 = dma.vmem_to_hbm [thread:$0]  %s33, 32, %s35, [#allocation1]
    %39 = dma.done [#allocation1], 32
    %40 = vsyncpa [#allocation1], 1

// kernel: _search_impl.1
$region0: #{_search_impl.1}
  #allocation0 [shape = 'u32[]', space=smem, size = 0x4, offset = 0x4, fixed_abs, tag = 'smem constant byte address 0x4 - core index']
  #allocation1 [shape = 'u32[72,128]{1,0:T(1,128)}', space=vmem, size = 0x9000, scoped, tag = 'internal scratch']
  %s0 = inlined_call_operand.vmem [shape: f32[2,3,128], index: 0, kind: input, shape index: {}]
  %s1 = inlined_call_operand.vmem [shape: f32[2,3,128], index: 1, kind: input, shape index: {}]
  %s2 = inlined_call_operand.vmem [shape: f32[32,3], index: 2, kind: input, shape index: {}]
  %s3 = inlined_call_operand.vmem [shape: f32[32,1], index: 3, kind: input, shape index: {}]
  %s4 = inlined_call_operand.vmem [shape: f32[32,32], index: 4, kind: input, shape index: {}]
  %s5 = inlined_call_operand.vmem [shape: f32[32,1], index: 5, kind: input, shape index: {}]
  %s6 = inlined_call_operand.vmem [shape: f32[24,32], index: 6, kind: input, shape index: {}]
  %s7 = inlined_call_operand.vmem [shape: f32[24,1], index: 7, kind: input, shape index: {}]
  %s8 = inlined_call_operand.vmem [shape: f32[2,12,24], index: 8, kind: input, shape index: {}]
  %s9 = inlined_call_operand.vmem [shape: f32[2,3,128], index: 9, kind: output, shape index: {0}]
  %s10 = inlined_call_operand.vmem [shape: f32[2,1,128], index: 10, kind: output, shape index: {1}]
  %11 = xla_tuple %s9, %s10
  %s12 = sld [smem:[#allocation0]]
  $region84: #{_search_impl.1} parent=0
    _
  %s14 = ssub.s32 1, %s12
  %s15 = scalar_select 0, %s14, %s12
  loop: start=0, step=1, limit=4
  $region2: #{_search_impl.1} parent=0 // loop_pre_header
    _
  $region3: #{_search_impl.1} parent=0 // loop_header
    %s17 = sphi 0, %s21
    %p18 = scmp.ge.s32.totalorder %s17, 4
    %s24 = sphi 0, %s36
    %s25 = sphi 0, %s32
    %s26 = sphi 0, %s24
    %s27 = sphi 0, %s25
    %s28 = sphi 0, %s26
    %s29 = sphi 0, %s27
    %s41 = sphi 0, %s43
    %s44 = sphi 0, %s41
    %s45 = sphi 0, %s44
    %s61 = sphi 0, %s45
    %s69 = sphi 0, %s71
    %s72 = sphi 0, %s69
    %s73 = sphi 0, %s72
    %s89 = sphi 0, %s73
    %s93 = sphi 0, %s93
    %s95 = sphi 0, %s93
    %s96 = sphi 0, %s95
    %s110 = sphi 0, %s96
    %s114 = sphi 0, %s114
    %s116 = sphi 0, %s114
    %s117 = sphi 0, %s116
    %s131 = sphi 0, %s117
    %s135 = sphi 0, %s135
    %s137 = sphi 0, %s135
    %s138 = sphi 0, %s137
    %s152 = sphi 0, %s138
    %s156 = sphi 0, %s156
    %s158 = sphi 0, %s156
    %s159 = sphi 0, %s158
    %s173 = sphi 0, %s159
    %s177 = sphi 0, %s177
    %s179 = sphi 0, %s177
    %s180 = sphi 0, %s179
    %s194 = sphi 0, %s180
    %s198 = sphi 0, %s198
    %s200 = sphi 0, %s198
    %s201 = sphi 0, %s200
    %s215 = sphi 0, %s201
    %s221 = sphi 0, %s223
    %s224 = sphi 0, %s221
    %s225 = sphi 0, %s224
    %s241 = sphi 0, %s225
    %s249 = sphi 0, %s251
    %s252 = sphi 0, %s249
    %s253 = sphi 0, %s252
    %s269 = sphi 0, %s253
    %s277 = sphi 0, %s279
    %s280 = sphi 0, %s277
    %s281 = sphi 0, %s280
    %s297 = sphi 0, %s281
  $region4: #{_search_impl.1} parent=0 // loop_header_branch
    %20 = sbr.rel (%p18) target = $region8
  $region5: #{_search_impl.1} parent=0 // loop_body
    %s22 = ssub.s32 %s17, 1
    %s23 = ssub.s32 %s17, 2
    %s30 = sadd.s32 1, %s25
    %p31 = scmp.ge.s32.totalorder %s30, 1
    %s32 = scalar_select %p31, 0, %s30
    %s33 = sadd.s32 1, %s24
    %s34 = scalar_select %p31, %s33, %s24
    %p35 = scmp.ge.s32.totalorder %s34, 2
    %s36 = scalar_select %p35, 0, %s34
    %s37 = ssub.s32 %s24, %s36
    %s38 = ssub.s32 %s25, %s32
    %s39 = sor.u32 %s37, %s38
    %p40 = scmp.eq.s32.totalorder %s39, 0
    %s42 = sadd.s32 %s41, 1
    %s43 = scalar_select %p40, %s41, %s42
    %p46 = pneg %p40
    %p47 = scmp.eq.s32.totalorder %s17, 1
    %p48 = por %p46, %p47
    %p49 = scmp.ne.s32.totalorder %s41, %s44
    %p50 = scmp.eq.s32.totalorder %s17, 0
    %p51 = por %p49, %p50
    %p52 = scmp.ne.s32.totalorder %s41, %s44
    %p53 = scmp.eq.s32.totalorder %s22, 1
    %p54 = por %p52, %p53
    %p55 = scmp.ne.s32.totalorder %s44, %s45
    %p56 = scmp.eq.s32.totalorder %s22, 0
    %p57 = por %p55, %p56
    %p58 = scmp.ne.s32.totalorder %s44, %s45
    %p59 = scmp.eq.s32.totalorder %s23, 1
    %p60 = por %p58, %p59
    %p62 = scmp.ne.s32.totalorder %s45, %s61
    %p63 = scmp.eq.s32.totalorder %s23, 0
    %p64 = por %p62, %p63
    %s65 = ssub.s32 %s24, %s36
    %s66 = ssub.s32 %s25, %s32
    %s67 = sor.u32 %s65, %s66
    %p68 = scmp.eq.s32.totalorder %s67, 0
    %s70 = sadd.s32 %s69, 1
    %s71 = scalar_select %p68, %s69, %s70
    %p74 = pneg %p68
    %p75 = scmp.eq.s32.totalorder %s17, 1
    %p76 = por %p74, %p75
    %p77 = scmp.ne.s32.totalorder %s69, %s72
    %p78 = scmp.eq.s32.totalorder %s17, 0
    %p79 = por %p77, %p78
    %p80 = scmp.ne.s32.totalorder %s69, %s72
    %p81 = scmp.eq.s32.totalorder %s22, 1
    %p82 = por %p80, %p81
    %p83 = scmp.ne.s32.totalorder %s72, %s73
    %p84 = scmp.eq.s32.totalorder %s22, 0
    %p85 = por %p83, %p84
    %p86 = scmp.ne.s32.totalorder %s72, %s73
    %p87 = scmp.eq.s32.totalorder %s23, 1
    %p88 = por %p86, %p87
    %p90 = scmp.ne.s32.totalorder %s73, %s89
    %p91 = scmp.eq.s32.totalorder %s23, 0
    %p92 = por %p90, %p91
    %s94 = sadd.s32 %s93, 1
    %p97 = scmp.eq.s32.totalorder %s17, 1
    %p98 = scmp.ne.s32.totalorder %s93, %s95
    %p99 = scmp.eq.s32.totalorder %s17, 0
    %p100 = por %p98, %p99
    %p101 = scmp.ne.s32.totalorder %s93, %s95
    %p102 = scmp.eq.s32.totalorder %s22, 1
    %p103 = por %p101, %p102
    %p104 = scmp.ne.s32.totalorder %s95, %s96
    %p105 = scmp.eq.s32.totalorder %s22, 0
    %p106 = por %p104, %p105
    %p107 = scmp.ne.s32.totalorder %s95, %s96
    %p108 = scmp.eq.s32.totalorder %s23, 1
    %p109 = por %p107, %p108
    %p111 = scmp.ne.s32.totalorder %s96, %s110
    %p112 = scmp.eq.s32.totalorder %s23, 0
    %p113 = por %p111, %p112
    %s115 = sadd.s32 %s114, 1
    %p118 = scmp.eq.s32.totalorder %s17, 1
    %p119 = scmp.ne.s32.totalorder %s114, %s116
    %p120 = scmp.eq.s32.totalorder %s17, 0
    %p121 = por %p119, %p120
    %p122 = scmp.ne.s32.totalorder %s114, %s116
    %p123 = scmp.eq.s32.totalorder %s22, 1
    %p124 = por %p122, %p123
    %p125 = scmp.ne.s32.totalorder %s116, %s117
    %p126 = scmp.eq.s32.totalorder %s22, 0
    %p127 = por %p125, %p126
    %p128 = scmp.ne.s32.totalorder %s116, %s117
    %p129 = scmp.eq.s32.totalorder %s23, 1
    %p130 = por %p128, %p129
    %p132 = scmp.ne.s32.totalorder %s117, %s131
    %p133 = scmp.eq.s32.totalorder %s23, 0
    %p134 = por %p132, %p133
    %s136 = sadd.s32 %s135, 1
    %p139 = scmp.eq.s32.totalorder %s17, 1
    %p140 = scmp.ne.s32.totalorder %s135, %s137
    %p141 = scmp.eq.s32.totalorder %s17, 0
    %p142 = por %p140, %p141
    %p143 = scmp.ne.s32.totalorder %s135, %s137
    %p144 = scmp.eq.s32.totalorder %s22, 1
    %p145 = por %p143, %p144
    %p146 = scmp.ne.s32.totalorder %s137, %s138
    %p147 = scmp.eq.s32.totalorder %s22, 0
    %p148 = por %p146, %p147
    %p149 = scmp.ne.s32.totalorder %s137, %s138
    %p150 = scmp.eq.s32.totalorder %s23, 1
    %p151 = por %p149, %p150
    %p153 = scmp.ne.s32.totalorder %s138, %s152
    %p154 = scmp.eq.s32.totalorder %s23, 0
    %p155 = por %p153, %p154
    %s157 = sadd.s32 %s156, 1
    %p160 = scmp.eq.s32.totalorder %s17, 1
    %p161 = scmp.ne.s32.totalorder %s156, %s158
    %p162 = scmp.eq.s32.totalorder %s17, 0
    %p163 = por %p161, %p162
    %p164 = scmp.ne.s32.totalorder %s156, %s158
    %p165 = scmp.eq.s32.totalorder %s22, 1
    %p166 = por %p164, %p165
    %p167 = scmp.ne.s32.totalorder %s158, %s159
    %p168 = scmp.eq.s32.totalorder %s22, 0
    %p169 = por %p167, %p168
    %p170 = scmp.ne.s32.totalorder %s158, %s159
    %p171 = scmp.eq.s32.totalorder %s23, 1
    %p172 = por %p170, %p171
    %p174 = scmp.ne.s32.totalorder %s159, %s173
    %p175 = scmp.eq.s32.totalorder %s23, 0
    %p176 = por %p174, %p175
    %s178 = sadd.s32 %s177, 1
    %p181 = scmp.eq.s32.totalorder %s17, 1
    %p182 = scmp.ne.s32.totalorder %s177, %s179
    %p183 = scmp.eq.s32.totalorder %s17, 0
    %p184 = por %p182, %p183
    %p185 = scmp.ne.s32.totalorder %s177, %s179
    %p186 = scmp.eq.s32.totalorder %s22, 1
    %p187 = por %p185, %p186
    %p188 = scmp.ne.s32.totalorder %s179, %s180
    %p189 = scmp.eq.s32.totalorder %s22, 0
    %p190 = por %p188, %p189
    %p191 = scmp.ne.s32.totalorder %s179, %s180
    %p192 = scmp.eq.s32.totalorder %s23, 1
    %p193 = por %p191, %p192
    %p195 = scmp.ne.s32.totalorder %s180, %s194
    %p196 = scmp.eq.s32.totalorder %s23, 0
    %p197 = por %p195, %p196
    %s199 = sadd.s32 %s198, 1
    %p202 = scmp.eq.s32.totalorder %s17, 1
    %p203 = scmp.ne.s32.totalorder %s198, %s200
    %p204 = scmp.eq.s32.totalorder %s17, 0
    %p205 = por %p203, %p204
    %p206 = scmp.ne.s32.totalorder %s198, %s200
    %p207 = scmp.eq.s32.totalorder %s22, 1
    %p208 = por %p206, %p207
    %p209 = scmp.ne.s32.totalorder %s200, %s201
    %p210 = scmp.eq.s32.totalorder %s22, 0
    %p211 = por %p209, %p210
    %p212 = scmp.ne.s32.totalorder %s200, %s201
    %p213 = scmp.eq.s32.totalorder %s23, 1
    %p214 = por %p212, %p213
    %p216 = scmp.ne.s32.totalorder %s201, %s215
    %p217 = scmp.eq.s32.totalorder %s23, 0
    %p218 = por %p216, %p217
    %s219 = ssub.s32 %s24, %s36
    %p220 = scmp.eq.s32.totalorder %s219, 0
    %s222 = sadd.s32 %s221, 1
    %s223 = scalar_select %p220, %s221, %s222
    %p226 = pneg %p220
    %p227 = scmp.eq.s32.totalorder %s17, 1
    %p228 = por %p226, %p227
    %p229 = scmp.ne.s32.totalorder %s221, %s224
    %p230 = scmp.eq.s32.totalorder %s17, 0
    %p231 = por %p229, %p230
    %p232 = scmp.ne.s32.totalorder %s221, %s224
    %p233 = scmp.eq.s32.totalorder %s22, 1
    %p234 = por %p232, %p233
    %p235 = scmp.ne.s32.totalorder %s224, %s225
    %p236 = scmp.eq.s32.totalorder %s22, 0
    %p237 = por %p235, %p236
    %p238 = scmp.ne.s32.totalorder %s224, %s225
    %p239 = scmp.eq.s32.totalorder %s23, 1
    %p240 = por %p238, %p239
    %p242 = scmp.ne.s32.totalorder %s225, %s241
    %p243 = scmp.eq.s32.totalorder %s23, 0
    %p244 = por %p242, %p243
    %s245 = ssub.s32 %s24, %s36
    %s246 = ssub.s32 %s25, %s32
    %s247 = sor.u32 %s245, %s246
    %p248 = scmp.eq.s32.totalorder %s247, 0
    %s250 = sadd.s32 %s249, 1
    %s251 = scalar_select %p248, %s249, %s250
    %p254 = pneg %p248
    %p255 = scmp.eq.s32.totalorder %s17, 1
    %p256 = por %p254, %p255
    %p257 = scmp.ne.s32.totalorder %s249, %s252
    %p258 = scmp.eq.s32.totalorder %s17, 0
    %p259 = por %p257, %p258
    %p260 = scmp.ne.s32.totalorder %s249, %s252
    %p261 = scmp.eq.s32.totalorder %s22, 1
    %p262 = por %p260, %p261
    %p263 = scmp.ne.s32.totalorder %s252, %s253
    %p264 = scmp.eq.s32.totalorder %s22, 0
    %p265 = por %p263, %p264
    %p266 = scmp.ne.s32.totalorder %s252, %s253
    %p267 = scmp.eq.s32.totalorder %s23, 1
    %p268 = por %p266, %p267
    %p270 = scmp.ne.s32.totalorder %s253, %s269
    %p271 = scmp.eq.s32.totalorder %s23, 0
    %p272 = por %p270, %p271
    %s273 = ssub.s32 %s24, %s36
    %s274 = ssub.s32 %s25, %s32
    %s275 = sor.u32 %s273, %s274
    %p276 = scmp.eq.s32.totalorder %s275, 0
    %s278 = sadd.s32 %s277, 1
    %s279 = scalar_select %p276, %s277, %s278
    %p282 = pneg %p276
    %p283 = scmp.eq.s32.totalorder %s17, 1
    %p284 = por %p282, %p283
    %p285 = scmp.ne.s32.totalorder %s277, %s280
    %p286 = scmp.eq.s32.totalorder %s17, 0
    %p287 = por %p285, %p286
    %p288 = scmp.ne.s32.totalorder %s277, %s280
    %p289 = scmp.eq.s32.totalorder %s22, 1
    %p290 = por %p288, %p289
    %p291 = scmp.ne.s32.totalorder %s280, %s281
    %p292 = scmp.eq.s32.totalorder %s22, 0
    %p293 = por %p291, %p292
    %p294 = scmp.ne.s32.totalorder %s280, %s281
    %p295 = scmp.eq.s32.totalorder %s23, 1
    %p296 = por %p294, %p295
    %p298 = scmp.ne.s32.totalorder %s281, %s297
    %p299 = scmp.eq.s32.totalorder %s23, 0
    %p300 = por %p298, %p299
    %p301 = scmp.le.s32.totalorder 1, %s17
    %p302 = scmp.lt.s32.totalorder %s17, 3
    %p303 = pnand %p301, %p302
    %p304 = pneg %p303
    // Predicated region
    $region9: #{_search_impl.1} parent=5 // pred_check
      _
    $region10: #{_search_impl.1} parent=5 // pred_check_branch
      %306 = sbr.rel (%p303) target = $region12
    $region11: #{_search_impl.1} parent=5 // pred_region
      %s307 = ssub.s32 %s17, 1
      // Predicated region
      $region13: #{_search_impl.1} parent=11 // pred_check
        %p308 = pneg %p106
      $region14: #{_search_impl.1} parent=11 // pred_check_branch
        %310 = sbr.rel (%p308) target = $region16
      $region15: #{_search_impl.1} parent=11 // pred_region
        _
      $region16: #{_search_impl.1} parent=11 // pred_fallthru
        _
      // Predicated region
      $region17: #{_search_impl.1} parent=11 // pred_check
        %p311 = pneg %p127
      $region18: #{_search_impl.1} parent=11 // pred_check_branch
        %313 = sbr.rel (%p311) target = $region20
      $region19: #{_search_impl.1} parent=11 // pred_region
        _
      $region20: #{_search_impl.1} parent=11 // pred_fallthru
        _
      // Predicated region
      $region21: #{_search_impl.1} parent=11 // pred_check
        %p314 = pneg %p148
      $region22: #{_search_impl.1} parent=11 // pred_check_branch
        %316 = sbr.rel (%p314) target = $region24
      $region23: #{_search_impl.1} parent=11 // pred_region
        _
      $region24: #{_search_impl.1} parent=11 // pred_fallthru
        _
      // Predicated region
      $region25: #{_search_impl.1} parent=11 // pred_check
        %p317 = pneg %p169
      $region26: #{_search_impl.1} parent=11 // pred_check_branch
        %319 = sbr.rel (%p317) target = $region28
      $region27: #{_search_impl.1} parent=11 // pred_region
        _
      $region28: #{_search_impl.1} parent=11 // pred_fallthru
        _
      // Predicated region
      $region29: #{_search_impl.1} parent=11 // pred_check
        %p320 = pneg %p190
      $region30: #{_search_impl.1} parent=11 // pred_check_branch
        %322 = sbr.rel (%p320) target = $region32
      $region31: #{_search_impl.1} parent=11 // pred_region
        _
      $region32: #{_search_impl.1} parent=11 // pred_fallthru
        _
      // Predicated region
      $region33: #{_search_impl.1} parent=11 // pred_check
        %p323 = pneg %p211
      $region34: #{_search_impl.1} parent=11 // pred_check_branch
        %325 = sbr.rel (%p323) target = $region36
      $region35: #{_search_impl.1} parent=11 // pred_region
        _
      $region36: #{_search_impl.1} parent=11 // pred_fallthru
        _
    $region12: #{_search_impl.1} parent=5 // pred_fallthru
      _
    %p326 = scmp.lt.s32.totalorder %s17, 2
    // Predicated region
    $region37: #{_search_impl.1} parent=5 // pred_check
      %p327 = pneg %p326
    $region38: #{_search_impl.1} parent=5 // pred_check_branch
      %329 = sbr.rel (%p327) target = $region40
    $region39: #{_search_impl.1} parent=5 // pred_region
      // Predicated region
      $region41: #{_search_impl.1} parent=39 // pred_check
        %p330 = pneg %p51
      $region42: #{_search_impl.1} parent=39 // pred_check_branch
        %332 = sbr.rel (%p330) target = $region44
      $region43: #{_search_impl.1} parent=39 // pred_region
        %p333 = scmp.lt.s32.totalorder %s24, 1
        %s334 = scalar_select %p333, %s24, 1
        %p335 = scmp.lt.s32.totalorder %s25, 0
        %s336 = scalar_select %p335, %s25, 0
        %s337 = sadd.s32 %s336, %s334
        %s338 = smul.addr %s337, 4
        %s339 = scalar_lea.vmem %s0, %s338
      $region44: #{_search_impl.1} parent=39 // pred_fallthru
        _
      // Predicated region
      $region45: #{_search_impl.1} parent=39 // pred_check
        %p340 = pneg %p79
      $region46: #{_search_impl.1} parent=39 // pred_check_branch
        %342 = sbr.rel (%p340) target = $region48
      $region47: #{_search_impl.1} parent=39 // pred_region
        %p343 = scmp.lt.s32.totalorder %s24, 1
        %s344 = scalar_select %p343, %s24, 1
        %p345 = scmp.lt.s32.totalorder %s25, 0
        %s346 = scalar_select %p345, %s25, 0
        %s347 = sadd.s32 %s346, %s344
        %s348 = smul.addr %s347, 4
        %s349 = scalar_lea.vmem %s1, %s348
      $region48: #{_search_impl.1} parent=39 // pred_fallthru
        _
      // Predicated region
      $region49: #{_search_impl.1} parent=39 // pred_check
        %p350 = pneg %p231
      $region50: #{_search_impl.1} parent=39 // pred_check_branch
        %352 = sbr.rel (%p350) target = $region52
      $region51: #{_search_impl.1} parent=39 // pred_region
        %p353 = scmp.lt.s32.totalorder %s24, 1
        %s354 = scalar_select %p353, %s24, 1
        %s355 = smul.addr %s354, 2
        %s356 = smul.addr %s355, 8
        %s357 = scalar_lea.vmem %s8, %s356
      $region52: #{_search_impl.1} parent=39 // pred_fallthru
        _
    $region40: #{_search_impl.1} parent=5 // pred_fallthru
      _
    %p358 = scmp.le.s32.totalorder 1, %s17
    %p359 = scmp.lt.s32.totalorder %s17, 3
    %p360 = pnand %p358, %p359
    %p361 = pneg %p360
    // Predicated region
    $region53: #{_search_impl.1} parent=5 // pred_check
      _
    $region54: #{_search_impl.1} parent=5 // pred_check_branch
      %363 = sbr.rel (%p360) target = $region56
    $region55: #{_search_impl.1} parent=5 // pred_region
      %s364 = ssub.s32 %s17, 1
      %p365 = scmp.lt.s32.totalorder %s26, 1
      %s366 = scalar_select %p365, %s26, 1
      %p367 = scmp.lt.s32.totalorder %s27, 0
      %s368 = scalar_select %p367, %s27, 0
      %s369 = sadd.s32 %s368, %s366
      %s370 = smul.addr %s369, 4
      %s371 = scalar_lea.vmem %s0, %s370
      %p372 = pneg %p57
      %p373 = pneg %p54
      %p374 = scmp.lt.s32.totalorder %s26, 1
      %s375 = scalar_select %p374, %s26, 1
      %p376 = scmp.lt.s32.totalorder %s27, 0
      %s377 = scalar_select %p376, %s27, 0
      %s378 = sadd.s32 %s377, %s375
      %s379 = smul.addr %s378, 4
      %s380 = scalar_lea.vmem %s1, %s379
      %p381 = pneg %p85
      %p382 = pneg %p82
      %p383 = pneg %p106
      %p384 = pneg %p103
      %p385 = pneg %p127
      %p386 = pneg %p124
      %p387 = pneg %p148
      %p388 = pneg %p145
      %p389 = pneg %p169
      %p390 = pneg %p166
      %p391 = pneg %p190
      %p392 = pneg %p187
      %p393 = pneg %p211
      %p394 = pneg %p208
      %p395 = scmp.lt.s32.totalorder %s26, 1
      %s396 = scalar_select %p395, %s26, 1
      %s397 = smul.addr %s396, 2
      %s398 = smul.addr %s397, 8
      %s399 = scalar_lea.vmem %s8, %s398
      %p400 = pneg %p237
      %p401 = pneg %p234
      %p402 = pneg %p265
      %p403 = pneg %p262
      %p404 = scmp.lt.s32.totalorder %s26, 1
      %s405 = scalar_select %p404, %s26, 1
      %p406 = scmp.lt.s32.totalorder %s27, 0
      %s407 = scalar_select %p406, %s27, 0
      %s408 = sadd.s32 %s407, %s405
      %s409 = smul.addr %s408, 4
      %s410 = scalar_lea.vmem %s9, %s409
      %p411 = pneg %p293
      %p412 = pneg %p290
      %p413 = scmp.lt.s32.totalorder %s26, 1
      %s414 = scalar_select %p413, %s26, 1
      %p415 = scmp.lt.s32.totalorder %s27, 0
      %s416 = scalar_select %p415, %s27, 0
      %s417 = sadd.s32 %s416, %s414
      %s418 = scalar_lea.vmem %s10, %s417
      %p419 = scmp.lt.s32.totalorder %s26, 1
      %s420 = scalar_select %p419, %s26, 1
      %p421 = scmp.lt.s32.totalorder %s27, 0
      %s422 = scalar_select %p421, %s27, 0
      %s423 = sadd.s32 %s422, %s420
      %s424 = smul.addr %s423, 4
      %s425 = scalar_lea.vmem %s0, %s424
      %p426 = scmp.lt.s32.totalorder %s26, 1
      %s427 = scalar_select %p426, %s26, 1
      %p428 = scmp.lt.s32.totalorder %s27, 0
      %s429 = scalar_select %p428, %s27, 0
      %s430 = sadd.s32 %s429, %s427
      %s431 = smul.addr %s430, 4
      %s432 = scalar_lea.vmem %s1, %s431
      %p433 = scmp.lt.s32.totalorder %s26, 1
      %s434 = scalar_select %p433, %s26, 1
      %s435 = smul.addr %s434, 2
      %s436 = smul.addr %s435, 8
      %s437 = scalar_lea.vmem %s8, %s436
      %p438 = scmp.lt.s32.totalorder %s26, 1
      %s439 = scalar_select %p438, %s26, 1
      %p440 = scmp.lt.s32.totalorder %s27, 0
      %s441 = scalar_select %p440, %s27, 0
      %s442 = sadd.s32 %s441, %s439
      %s443 = smul.addr %s442, 4
      %s444 = scalar_lea.vmem %s9, %s443
      %p445 = scmp.lt.s32.totalorder %s26, 1
      %s446 = scalar_select %p445, %s26, 1
      %p447 = scmp.lt.s32.totalorder %s27, 0
      %s448 = scalar_select %p447, %s27, 0
      %s449 = sadd.s32 %s448, %s446
      %s450 = scalar_lea.vmem %s10, %s449
      %v451 = vld [vmem:[%s2] sm:$0xff]
      %v452 = vld [vmem:[%s2 + $0x8] sm:$0xff]
      %v453 = vld [vmem:[%s2 + $0x10] sm:$0xff]
      %v454 = vld [vmem:[%s2 + $0x18] sm:$0xff]
      %v455 = vld [vmem:[%s3] sm:$0xff]
      %v456 = vld [vmem:[%s3 + $0x8] sm:$0xff]
      %v457 = vld [vmem:[%s3 + $0x10] sm:$0xff]
      %v458 = vld [vmem:[%s3 + $0x18] sm:$0xff]
      %v459 = vld [vmem:[%s4] sm:$0xff]
      %v460 = vld [vmem:[%s4 + $0x8] sm:$0xff]
      %v461 = vld [vmem:[%s4 + $0x10] sm:$0xff]
      %v462 = vld [vmem:[%s4 + $0x18] sm:$0xff]
      %v463 = vld [vmem:[%s5] sm:$0xff]
      %v464 = vld [vmem:[%s5 + $0x8] sm:$0xff]
      %v465 = vld [vmem:[%s5 + $0x10] sm:$0xff]
      %v466 = vld [vmem:[%s5 + $0x18] sm:$0xff]
      %v467 = vld [vmem:[%s6] sm:$0xff]
      %v468 = vld [vmem:[%s6 + $0x8] sm:$0xff]
      %v469 = vld [vmem:[%s6 + $0x10] sm:$0xff]
      %v470 = vld [vmem:[%s7] sm:$0xff]
      %v471 = vld [vmem:[%s7 + $0x8] sm:$0xff]
      %v472 = vld [vmem:[%s7 + $0x10] sm:$0xff]
      %v473 = vld [vmem:[%s437] sm:$0xff]
      %v474 = vld [vmem:[%s437 + $0x8] sm:$0xf]
      %v475 = vld [vmem:[%s432] sm:$0x7]
      %v476 = vld [vmem:[%s425] sm:$0x7]
      %v477 = vlaneseq
      %v478 = vand.u32 %v477, 127
      %s479 = smul.u32 %s27, 128
      %v480 = vstv %s479
      %v481 = vadd.s32 %v480, %v478
      %vm482 = vcmp.lt.s32.totalorder %v481, 72
      %484 = vset.pattern.permute.xlu0 0
      %485 = vperm.xlu0 %484, %v455
      %v486 = vpop.permute.xlu0 %485
      %489 = vset.pattern.permute.xlu0 0
      %490 = vperm.xlu0 %489, %v456
      %v491 = vpop.permute.xlu0 %490
      %494 = vset.pattern.permute.xlu0 0
      %495 = vperm.xlu0 %494, %v457
      %v496 = vpop.permute.xlu0 %495
      %499 = vset.pattern.permute.xlu0 0
      %500 = vperm.xlu0 %499, %v458
      %v501 = vpop.permute.xlu0 %500
      %vm503 = vcmask 23552
      %v505 = vsel %vm503, %v451, 0
      %v508 = vsel %vm503, %v452, 0
      %v511 = vsel %vm503, %v453, 0
      %v514 = vsel %vm503, %v454, 0
      %vm516 = vcmask 1042432
      %v518 = vsel %vm516, %v476, 0
      %520 = vmatpush.msra.mxu0 0.0
      %521 = vmatpush.msra.mxu0 0.0
      %522 = vmatpush.msra.mxu0 0.0
      %523 = vmatpush.msra.mxu0 0.0
      %524 = vmatpush.msra.mxu0 0.0
      %525 = vmatpush.msra.mxu0 0.0
      %526 = vmatpush.msra.mxu0 0.0
      %527 = vmatpush.msra.mxu0 0.0
      %528 = vmatpush.msra.mxu0 0.0
      %529 = vmatpush.msra.mxu0 0.0
      %530 = vmatpush.msra.mxu0 0.0
      %531 = vmatpush.msra.mxu0 0.0
      %532 = vmatpush.msra.mxu0 0.0
      %533 = vmatpush.msra.mxu0 0.0
      %534 = vmatpush.msra.mxu0 0.0
      %535 = vmatpush.msra.mxu0 %v518
      %536 = vmatmul.f32.gmra.mxu0 %v505
      %v537 = vpop.f32.mrf.mxu0
      %v538 = vadd.f32 %v486, %v537
      %539 = vmatmul.f32.gmra.mxu0 %v508
      %v540 = vpop.f32.mrf.mxu0
      %v541 = vadd.f32 %v491, %v540
      %542 = vmatmul.f32.gmra.mxu0 %v511
      %v543 = vpop.f32.mrf.mxu0
      %v544 = vadd.f32 %v496, %v543
      %545 = vmatmul.f32.gmra.mxu0 %v514
      %v546 = vpop.f32.mrf.mxu0
      %v547 = vadd.f32 %v501, %v546
      %548 = vdwg.mxu0
      %v549 = vmax.f32 %v538, 0.0
      %v550 = vmax.f32 %v541, 0.0
      %v551 = vmax.f32 %v544, 0.0
      %v552 = vmax.f32 %v547, 0.0
      %554 = vset.pattern.permute.xlu0 0
      %555 = vperm.xlu0 %554, %v463
      %v556 = vpop.permute.xlu0 %555
      %559 = vset.pattern.permute.xlu0 0
      %560 = vperm.xlu0 %559, %v464
      %v561 = vpop.permute.xlu0 %560
      %564 = vset.pattern.permute.xlu0 0
      %565 = vperm.xlu0 %564, %v465
      %v566 = vpop.permute.xlu0 %565
      %569 = vset.pattern.permute.xlu0 0
      %570 = vperm.xlu0 %569, %v466
      %v571 = vpop.permute.xlu0 %570
      %vm573 = vcmask 261120
      %v575 = vsel %vm573, %v459, 0
      %v578 = vsel %vm573, %v460, 0
      %v581 = vsel %vm573, %v461, 0
      %v584 = vsel %vm573, %v462, 0
      %586 = vmatpush.msra.mxu0 0.0
      %587 = vmatpush.msra.mxu0 0.0
      %588 = vmatpush.msra.mxu0 0.0
      %589 = vmatpush.msra.mxu0 0.0
      %590 = vmatpush.msra.mxu0 0.0
      %591 = vmatpush.msra.mxu0 0.0
      %592 = vmatpush.msra.mxu0 0.0
      %593 = vmatpush.msra.mxu0 0.0
      %594 = vmatpush.msra.mxu0 0.0
      %595 = vmatpush.msra.mxu0 0.0
      %596 = vmatpush.msra.mxu0 0.0
      %597 = vmatpush.msra.mxu0 0.0
      %598 = vmatpush.msra.mxu0 %v552
      %599 = vmatpush.msra.mxu0 %v551
      %600 = vmatpush.msra.mxu0 %v550
      %601 = vmatpush.msra.mxu0 %v549
      %602 = vmatmul.f32.gmra.mxu0 %v575
      %v603 = vpop.f32.mrf.mxu0
      %v604 = vadd.f32 %v556, %v603
      %605 = vmatmul.f32.gmra.mxu0 %v578
      %v606 = vpop.f32.mrf.mxu0
      %v607 = vadd.f32 %v561, %v606
      %608 = vmatmul.f32.gmra.mxu0 %v581
      %v609 = vpop.f32.mrf.mxu0
      %v610 = vadd.f32 %v566, %v609
      %611 = vmatmul.f32.gmra.mxu0 %v584
      %v612 = vpop.f32.mrf.mxu0
      %v613 = vadd.f32 %v571, %v612
      %614 = vdwg.mxu0
      %v615 = vmax.f32 %v604, 0.0
      %v616 = vmax.f32 %v607, 0.0
      %v617 = vmax.f32 %v610, 0.0
      %v618 = vmax.f32 %v613, 0.0
      %620 = vset.pattern.permute.xlu0 0
      %621 = vperm.xlu0 %620, %v470
      %v622 = vpop.permute.xlu0 %621
      %625 = vset.pattern.permute.xlu0 0
      %626 = vperm.xlu0 %625, %v471
      %v627 = vpop.permute.xlu0 %626
      %630 = vset.pattern.permute.xlu0 0
      %631 = vperm.xlu0 %630, %v472
      %v632 = vpop.permute.xlu0 %631
      %v635 = vsel %vm573, %v467, 0
      %v638 = vsel %vm573, %v468, 0
      %v641 = vsel %vm573, %v469, 0
      %643 = vmatpush.msra.mxu0 0.0
      %644 = vmatpush.msra.mxu0 0.0
      %645 = vmatpush.msra.mxu0 0.0
      %646 = vmatpush.msra.mxu0 0.0
      %647 = vmatpush.msra.mxu0 0.0
      %648 = vmatpush.msra.mxu0 0.0
      %649 = vmatpush.msra.mxu0 0.0
      %650 = vmatpush.msra.mxu0 0.0
      %651 = vmatpush.msra.mxu0 0.0
      %652 = vmatpush.msra.mxu0 0.0
      %653 = vmatpush.msra.mxu0 0.0
      %654 = vmatpush.msra.mxu0 0.0
      %655 = vmatpush.msra.mxu0 %v618
      %656 = vmatpush.msra.mxu0 %v617
      %657 = vmatpush.msra.mxu0 %v616
      %658 = vmatpush.msra.mxu0 %v615
      %659 = vmatmul.f32.gmra.mxu0 %v635
      %v660 = vpop.f32.mrf.mxu0
      %v661 = vadd.f32 %v622, %v660
      %662 = vmatmul.f32.gmra.mxu0 %v638
      %v663 = vpop.f32.mrf.mxu0
      %v664 = vadd.f32 %v627, %v663
      %665 = vmatmul.f32.gmra.mxu0 %v641
      %v666 = vpop.f32.mrf.mxu0
      %v667 = vadd.f32 %v632, %v666
      %668 = vdwg.mxu0
      %v669 = vmul.f32 %v661, 20.0
      %v670 = vmul.f32 %v664, 20.0
      %v671 = vmul.f32 %v667, 20.0
      %v672 = vmax.f32 %v669, %v670
      %v673 = vmax.f32 %v672, %v671
      %v674 = vrot.slane %v673, 4
      %v675 = vmax.f32 %v673, %v674
      %v676 = vrot.slane %v675, 2
      %v677 = vmax.f32 %v675, %v676
      %v678 = vrot.slane %v677, 1
      %v679 = vmax.f32 %v677, %v678
      %v680 = vsub.f32 %v669, %v679
      %v681 = vsub.f32 %v670, %v679
      %v682 = vsub.f32 %v671, %v679
      %v683 = vmul.f32 %v680, 1.442695
      %v684 = vpow.pop %v683
      %v685 = vmul.f32 %v681, 1.442695
      %v686 = vpow.pop %v685
      %v687 = vmul.f32 %v682, 1.442695
      %v688 = vpow.pop %v687
      %v689 = vadd.f32 %v684, %v686
      %v690 = vadd.f32 %v689, %v688
      %v691 = vrot.slane %v690, 4
      %v692 = vadd.f32 %v690, %v691
      %v693 = vrot.slane %v692, 2
      %v694 = vadd.f32 %v692, %v693
      %v695 = vrot.slane %v694, 1
      %v696 = vadd.f32 %v694, %v695
      %v697 = vrcp.pop %v696
      %v698 = vmul.f32 %v696, %v697
      %v699 = vsub.f32 1.0, %v698
      %v700 = vmul.f32 %v697, %v699
      %v701 = vadd.f32 %v697, %v700
      %vm702 = vweird.f32 %v696
      %vm703 = vweird.f32 %v697
      %vm704 = vmor %vm702, %vm703
      %v705 = vsel %vm704, %v697, %v701
      %v706 = vand.u32 2147483647, %v696
      %vm707 = vcmp.eq.f32.partialorder %v706, 8.507059e+37
      %v708 = vand.u32 %v696, 2147483648
      %v709 = vor.u32 1.1754944e-38, %v708
      %v710 = vsel %vm707, %v709, %v705
      %v711 = vmul.f32 %v684, %v710
      %v712 = vmul.f32 %v686, %v710
      %v713 = vmul.f32 %v688, %v710
      %vm714 = vcmask 195584
      %v716 = vsel %vm714, %v473, 0
      %v719 = vsel %vm714, %v474, 0
      %721 = vmatpush.msra.mxu0 0.0
      %722 = vmatpush.msra.mxu0 0.0
      %723 = vmatpush.msra.mxu0 0.0
      %724 = vmatpush.msra.mxu0 0.0
      %725 = vmatpush.msra.mxu0 0.0
      %726 = vmatpush.msra.mxu0 0.0
      %727 = vmatpush.msra.mxu0 0.0
      %728 = vmatpush.msra.mxu0 0.0
      %729 = vmatpush.msra.mxu0 0.0
      %730 = vmatpush.msra.mxu0 0.0
      %731 = vmatpush.msra.mxu0 0.0
      %732 = vmatpush.msra.mxu0 0.0
      %733 = vmatpush.msra.mxu0 0.0
      %734 = vmatpush.msra.mxu0 %v713
      %735 = vmatpush.msra.mxu0 %v712
      %736 = vmatpush.msra.mxu0 %v711
      %737 = vmatmul.f32.gmra.mxu0 %v716
      %v738 = vpop.f32.mrf.mxu0
      %v739 = vadd.f32 0.0, %v738
      %740 = vmatmul.f32.gmra.mxu0 %v719
      %v741 = vpop.f32.mrf.mxu0
      %v742 = vadd.f32 0.0, %v741
      %743 = vdwg.mxu0
      %v745 = vrot.slane %v742, 4
      %v747 = vmul.f32 %v739, %v745
      %v749 = vrot.slane %v739, 6
      %v751 = vmul.f32 %v739, %v749
      %v753 = vrot.slane %v751, 3
      %v755 = vsub.f32 %v747, %v753
      %v756 = vrot.slane %v739, 7
      %v758 = vmul.f32 %v739, %v756
      %v759 = vrot.slane %v742, 5
      %v761 = vmul.f32 %v739, %v759
      %v763 = vrot.slane %v761, 5
      %v765 = vsub.f32 %v758, %v763
      %v766 = vrot.slane %v739, 4
      %v768 = vmul.f32 %v739, %v766
      %v769 = vsub.f32 %v768, %v753
      %v770 = vrot.slane %v739, 3
      %v772 = vmul.f32 %v739, %v770
      %v773 = vrot.slane %v742, 7
      %v775 = vmul.f32 %v739, %v773
      %v777 = vrot.slane %v775, 2
      %v779 = vsub.f32 %v772, %v777
      %v780 = vmul.f32 %v739, %v742
      %v782 = vrot.slane %v768, 6
      %v784 = vsub.f32 %v780, %v782
      %v786 = vrot.slane %v758, 2
      %v788 = vsub.f32 %v772, %v786
      %v789 = vrot.slane %v739, 5
      %v791 = vmul.f32 %v739, %v789
      %v793 = vrot.slane %v791, 5
      %v795 = vsub.f32 %v758, %v793
      %v797 = vrot.slane %v755, 4
      %v799 = vmul.f32 %v739, %v797
      %v801 = vrot.slane %v779, 4
      %v803 = vmul.f32 %v739, %v801
      %v805 = vrot.slane %v803, 3
      %v807 = vadd.f32 %v799, %v805
      %v809 = vrot.slane %v769, 3
      %v811 = vmul.f32 %v739, %v809
      %v813 = vrot.slane %v811, 6
      %v815 = vadd.f32 %v807, %v813
      %v816 = vand.u32 2147483647, %v815
      %vm817 = vcmp.lt.f32.partialorder %v816, 1e-20
      %v818 = vsel %vm817, 1e-20, %v815
      %v819 = vrcp.pop %v818
      %v820 = vmul.f32 %v818, %v819
      %v821 = vsub.f32 1.0, %v820
      %v822 = vmul.f32 %v819, %v821
      %v823 = vadd.f32 %v819, %v822
      %vm824 = vweird.f32 %v818
      %vm825 = vweird.f32 %v819
      %vm826 = vmor %vm824, %vm825
      %v827 = vsel %vm826, %v819, %v823
      %v828 = vand.u32 2147483647, %v818
      %vm829 = vcmp.eq.f32.partialorder %v828, 8.507059e+37
      %v830 = vand.u32 %v818, 2147483648
      %v831 = vor.u32 1.1754944e-38, %v830
      %v832 = vsel %vm829, %v831, %v827
      %v833 = vmul.f32 1.0, %v832
      %v835 = vrot.slane %v765, 5
      %v837 = vrot.slane %v769, 1
      %v840 = vrot.slane %v784, 4
      %v843 = vrot.slane %v788, 1
      %v846 = vrot.slane %v795, 4
      %vm848 = vcmask 1040384
      %v849 = vsel %vm848, %v797, %v835
      %vm850 = vcmask 1041408
      %v851 = vsel %vm850, %v849, %v837
      %v852 = vsel %vm516, %v851, %v801
      %vm853 = vcmask 1043456
      %v854 = vsel %vm853, %v852, %v840
      %vm855 = vcmask 1044480
      %v856 = vsel %vm855, %v854, %v843
      %vm857 = vcmask 1045504
      %v858 = vsel %vm857, %v856, %v809
      %vm859 = vcmask 1046528
      %v860 = vsel %vm859, %v858, %v846
      %v861 = vperm.slane %v833, 0
      %v862 = vmul.f32 %v860, %v861
      %v863 = vmul.f32 %v769, %v861
      %v864 = vmul.f32 %v739, %v476
      %v865 = vrot.slane %v476, 6
      %v867 = vmul.f32 %v739, %v865
      %v869 = vrot.slane %v867, 3
      %v871 = vadd.f32 %v864, %v869
      %v872 = vrot.slane %v476, 4
      %v874 = vmul.f32 %v739, %v872
      %v876 = vrot.slane %v874, 6
      %v878 = vadd.f32 %v871, %v876
      %v879 = vrot.slane %v742, 1
      %v881 = vadd.f32 %v878, %v879
      %v882 = vrot.slane %v476, 7
      %v884 = vmul.f32 %v739, %v882
      %v885 = vrot.slane %v476, 5
      %v887 = vmul.f32 %v739, %v885
      %v889 = vrot.slane %v887, 3
      %v891 = vadd.f32 %v884, %v889
      %v892 = vrot.slane %v476, 3
      %v894 = vmul.f32 %v739, %v892
      %v896 = vrot.slane %v894, 6
      %v898 = vadd.f32 %v891, %v896
      %v899 = vadd.f32 %v898, %v879
      %v900 = vrot.slane %v874, 3
      %v902 = vadd.f32 %v867, %v900
      %v903 = vrot.slane %v476, 2
      %v905 = vmul.f32 %v742, %v903
      %v907 = vrot.slane %v905, 6
      %v909 = vadd.f32 %v902, %v907
      %v910 = vadd.f32 %v909, %v879
      %v911 = vsel %vm848, %v881, %v899
      %v912 = vsel %vm850, %v911, %v910
      %v913 = vsub.f32 %v912, %v475
      %v914 = vmul.f32 %v862, %v913
      %v916 = vrot.slane %v914, 1
      %v918 = vadd.f32 %v914, %v916
      %v919 = vrot.slane %v914, 2
      %v921 = vadd.f32 %v918, %v919
      %v923 = vrot.slane %v913, 5
      %v925 = vmul.f32 %v862, %v923
      %v927 = vrot.slane %v925, 1
      %v929 = vadd.f32 %v925, %v927
      %v930 = vrot.slane %v925, 2
      %v932 = vadd.f32 %v929, %v930
      %v933 = vrot.slane %v913, 2
      %v935 = vmul.f32 %v862, %v933
      %v937 = vrot.slane %v935, 1
      %v939 = vadd.f32 %v935, %v937
      %v940 = vmul.f32 %v863, %v933
      %v942 = vrot.slane %v940, 2
      %v944 = vadd.f32 %v939, %v942
      %v946 = vrot.slane %v932, 2
      %v949 = vrot.slane %v944, 4
      %v951 = vsel %vm848, %v921, %v946
      %v952 = vsel %vm850, %v951, %v949
      %v953 = vsub.f32 0.0, %v952
      %v954 = vmul.f32 %v913, %v913
      %v955 = vsel %vm516, %v954, 0.0
      %v956 = vrot.slane %v955, 4
      %v957 = vadd.f32 %v955, %v956
      %v958 = vrot.slane %v957, 2
      %v959 = vadd.f32 %v957, %v958
      %v960 = vrot.slane %v959, 1
      %v961 = vadd.f32 %v959, %v960
      %v962 = vrsqrt.pop %v961
      %v963 = vmul.f32 %v962, %v961
      %v964 = vmul.f32 %v963, %v962
      %v965 = vmul.f32 0.5, %v964
      %v966 = vsub.f32 1.5, %v965
      %v967 = vmul.f32 %v962, %v966
      %v968 = vmul.f32 %v961, %v967
      %vm969 = vcmp.eq.f32.partialorder %v961, inf
      %v970 = vsel %vm969, %v961, %v968
      %vm971 = vcmp.eq.f32.partialorder %v961, 0.0
      %v972 = vand.u32 %v961, 2147483648
      %v973 = vsel %vm971, %v972, %v970
      %v974 = vsel %vm482, 1, 0
      %v975 = vcvt.s32.f32 %v974
      %v976 = vsel %vm848, %v975, 0.0
      %977 = vadd.xlane.f32.xlu0 %v976
      %v978 = vpop.xlane.xlu0 %977
      %v979 = vrot.slane %v978, 4
      %v980 = vadd.f32 %v978, %v979
      %v981 = vrot.slane %v980, 2
      %v982 = vadd.f32 %v980, %v981
      %v983 = vrot.slane %v982, 1
      %v984 = vadd.f32 %v982, %v983
      %s985 = vtos %v984
      // While loop
      $region57: #{_search_impl.1} parent=55 // loop_pre_header
        _
      $region58: #{_search_impl.1} parent=55 // loop_header
        %s987 = sphi 0, %s1461
        %s988 = sphi %s985, %s1471
        %v989 = vphi %v476, %v1009
        %v990 = vphi %v913, %v1227
        %v991 = vphi %v862, %v1418
        %v992 = vphi %v863, %v1419
        %v993 = vphi %v953, %v1459
        %v994 = vphi 0.0, %v1007
        %v995 = vphi 0.0, %v1225
        %v996 = vphi %v973, %v1248
        %v997 = vphi %v975, %v1460
        %p998 = scmp.lt.s32.totalorder %s987, 50
        %p999 = scmp.gt.f32.partialorder %s988, 0.5
        %p1000 = pnand %p998, %p999
        %p1001 = pneg %p1000
      $region59: #{_search_impl.1} parent=55 // loop_header_branch
        %1003 = sbr.rel (%p1000) target = $region63
      $region60: #{_search_impl.1} parent=55 // loop_body
        %vm1004 = vcmp.gt.f32.partialorder %v997, 0.5
        %v1005 = vsel %vm1004, 1, 0
        %vm1006 = vcmp.eq.s32.totalorder %v1005, 1
        %v1007 = vsel %vm1006, %v993, %v994
        %v1008 = vadd.f32 %v989, %v1007
        %v1009 = vsel %vm1006, %v1008, %v989
        %v1011 = vsel %vm516, %v1009, 0
        %1013 = vmatpush.msra.mxu0 0.0
        %1014 = vmatpush.msra.mxu0 0.0
        %1015 = vmatpush.msra.mxu0 0.0
        %1016 = vmatpush.msra.mxu0 0.0
        %1017 = vmatpush.msra.mxu0 0.0
        %1018 = vmatpush.msra.mxu0 0.0
        %1019 = vmatpush.msra.mxu0 0.0
        %1020 = vmatpush.msra.mxu0 0.0
        %1021 = vmatpush.msra.mxu0 0.0
        %1022 = vmatpush.msra.mxu0 0.0
        %1023 = vmatpush.msra.mxu0 0.0
        %1024 = vmatpush.msra.mxu0 0.0
        %1025 = vmatpush.msra.mxu0 0.0
        %1026 = vmatpush.msra.mxu0 0.0
        %1027 = vmatpush.msra.mxu0 0.0
        %1028 = vmatpush.msra.mxu0 %v1011
        %1029 = vmatmul.f32.gmra.mxu0 %v505
        %v1030 = vpop.f32.mrf.mxu0
        %v1031 = vadd.f32 %v486, %v1030
        %1032 = vmatmul.f32.gmra.mxu0 %v508
        %v1033 = vpop.f32.mrf.mxu0
        %v1034 = vadd.f32 %v491, %v1033
        %1035 = vmatmul.f32.gmra.mxu0 %v511
        %v1036 = vpop.f32.mrf.mxu0
        %v1037 = vadd.f32 %v496, %v1036
        %1038 = vmatmul.f32.gmra.mxu0 %v514
        %v1039 = vpop.f32.mrf.mxu0
        %v1040 = vadd.f32 %v501, %v1039
        %1041 = vdwg.mxu0
        %v1042 = vmax.f32 %v1031, 0.0
        %v1043 = vmax.f32 %v1034, 0.0
        %v1044 = vmax.f32 %v1037, 0.0
        %v1045 = vmax.f32 %v1040, 0.0
        %1046 = vmatpush.msra.mxu0 0.0
        %1047 = vmatpush.msra.mxu0 0.0
        %1048 = vmatpush.msra.mxu0 0.0
        %1049 = vmatpush.msra.mxu0 0.0
        %1050 = vmatpush.msra.mxu0 0.0
        %1051 = vmatpush.msra.mxu0 0.0
        %1052 = vmatpush.msra.mxu0 0.0
        %1053 = vmatpush.msra.mxu0 0.0
        %1054 = vmatpush.msra.mxu0 0.0
        %1055 = vmatpush.msra.mxu0 0.0
        %1056 = vmatpush.msra.mxu0 0.0
        %1057 = vmatpush.msra.mxu0 0.0
        %1058 = vmatpush.msra.mxu0 %v1045
        %1059 = vmatpush.msra.mxu0 %v1044
        %1060 = vmatpush.msra.mxu0 %v1043
        %1061 = vmatpush.msra.mxu0 %v1042
        %1062 = vmatmul.f32.gmra.mxu0 %v575
        %v1063 = vpop.f32.mrf.mxu0
        %v1064 = vadd.f32 %v556, %v1063
        %1065 = vmatmul.f32.gmra.mxu0 %v578
        %v1066 = vpop.f32.mrf.mxu0
        %v1067 = vadd.f32 %v561, %v1066
        %1068 = vmatmul.f32.gmra.mxu0 %v581
        %v1069 = vpop.f32.mrf.mxu0
        %v1070 = vadd.f32 %v566, %v1069
        %1071 = vmatmul.f32.gmra.mxu0 %v584
        %v1072 = vpop.f32.mrf.mxu0
        %v1073 = vadd.f32 %v571, %v1072
        %1074 = vdwg.mxu0
        %v1075 = vmax.f32 %v1064, 0.0
        %v1076 = vmax.f32 %v1067, 0.0
        %v1077 = vmax.f32 %v1070, 0.0
        %v1078 = vmax.f32 %v1073, 0.0
        %1079 = vmatpush.msra.mxu0 0.0
        %1080 = vmatpush.msra.mxu0 0.0
        %1081 = vmatpush.msra.mxu0 0.0
        %1082 = vmatpush.msra.mxu0 0.0
        %1083 = vmatpush.msra.mxu0 0.0
        %1084 = vmatpush.msra.mxu0 0.0
        %1085 = vmatpush.msra.mxu0 0.0
        %1086 = vmatpush.msra.mxu0 0.0
        %1087 = vmatpush.msra.mxu0 0.0
        %1088 = vmatpush.msra.mxu0 0.0
        %1089 = vmatpush.msra.mxu0 0.0
        %1090 = vmatpush.msra.mxu0 0.0
        %1091 = vmatpush.msra.mxu0 %v1078
        %1092 = vmatpush.msra.mxu0 %v1077
        %1093 = vmatpush.msra.mxu0 %v1076
        %1094 = vmatpush.msra.mxu0 %v1075
        %1095 = vmatmul.f32.gmra.mxu0 %v635
        %v1096 = vpop.f32.mrf.mxu0
        %v1097 = vadd.f32 %v622, %v1096
        %1098 = vmatmul.f32.gmra.mxu0 %v638
        %v1099 = vpop.f32.mrf.mxu0
        %v1100 = vadd.f32 %v627, %v1099
        %1101 = vmatmul.f32.gmra.mxu0 %v641
        %v1102 = vpop.f32.mrf.mxu0
        %v1103 = vadd.f32 %v632, %v1102
        %1104 = vdwg.mxu0
        %v1105 = vmul.f32 %v1097, 20.0
        %v1106 = vmul.f32 %v1100, 20.0
        %v1107 = vmul.f32 %v1103, 20.0
        %v1108 = vmax.f32 %v1105, %v1106
        %v1109 = vmax.f32 %v1108, %v1107
        %v1110 = vrot.slane %v1109, 4
        %v1111 = vmax.f32 %v1109, %v1110
        %v1112 = vrot.slane %v1111, 2
        %v1113 = vmax.f32 %v1111, %v1112
        %v1114 = vrot.slane %v1113, 1
        %v1115 = vmax.f32 %v1113, %v1114
        %v1116 = vsub.f32 %v1105, %v1115
        %v1117 = vsub.f32 %v1106, %v1115
        %v1118 = vsub.f32 %v1107, %v1115
        %v1119 = vmul.f32 %v1116, 1.442695
        %v1120 = vpow.pop %v1119
        %v1121 = vmul.f32 %v1117, 1.442695
        %v1122 = vpow.pop %v1121
        %v1123 = vmul.f32 %v1118, 1.442695
        %v1124 = vpow.pop %v1123
        %v1125 = vadd.f32 %v1120, %v1122
        %v1126 = vadd.f32 %v1125, %v1124
        %v1127 = vrot.slane %v1126, 4
        %v1128 = vadd.f32 %v1126, %v1127
        %v1129 = vrot.slane %v1128, 2
        %v1130 = vadd.f32 %v1128, %v1129
        %v1131 = vrot.slane %v1130, 1
        %v1132 = vadd.f32 %v1130, %v1131
        %v1133 = vrcp.pop %v1132
        %v1134 = vmul.f32 %v1132, %v1133
        %v1135 = vsub.f32 1.0, %v1134
        %v1136 = vmul.f32 %v1133, %v1135
        %v1137 = vadd.f32 %v1133, %v1136
        %vm1138 = vweird.f32 %v1132
        %vm1139 = vweird.f32 %v1133
        %vm1140 = vmor %vm1138, %vm1139
        %v1141 = vsel %vm1140, %v1133, %v1137
        %v1142 = vand.u32 2147483647, %v1132
        %vm1143 = vcmp.eq.f32.partialorder %v1142, 8.507059e+37
        %v1144 = vand.u32 %v1132, 2147483648
        %v1145 = vor.u32 1.1754944e-38, %v1144
        %v1146 = vsel %vm1143, %v1145, %v1141
        %v1147 = vmul.f32 %v1120, %v1146
        %v1148 = vmul.f32 %v1122, %v1146
        %v1149 = vmul.f32 %v1124, %v1146
        %1150 = vmatpush.msra.mxu0 0.0
        %1151 = vmatpush.msra.mxu0 0.0
        %1152 = vmatpush.msra.mxu0 0.0
        %1153 = vmatpush.msra.mxu0 0.0
        %1154 = vmatpush.msra.mxu0 0.0
        %1155 = vmatpush.msra.mxu0 0.0
        %1156 = vmatpush.msra.mxu0 0.0
        %1157 = vmatpush.msra.mxu0 0.0
        %1158 = vmatpush.msra.mxu0 0.0
        %1159 = vmatpush.msra.mxu0 0.0
        %1160 = vmatpush.msra.mxu0 0.0
        %1161 = vmatpush.msra.mxu0 0.0
        %1162 = vmatpush.msra.mxu0 0.0
        %1163 = vmatpush.msra.mxu0 %v1149
        %1164 = vmatpush.msra.mxu0 %v1148
        %1165 = vmatpush.msra.mxu0 %v1147
        %1166 = vmatmul.f32.gmra.mxu0 %v716
        %v1167 = vpop.f32.mrf.mxu0
        %v1168 = vadd.f32 0.0, %v1167
        %1169 = vmatmul.f32.gmra.mxu0 %v719
        %v1170 = vpop.f32.mrf.mxu0
        %v1171 = vadd.f32 0.0, %v1170
        %1172 = vdwg.mxu0
        %v1173 = vmul.f32 %v1168, %v1009
        %v1174 = vrot.slane %v1009, 6
        %v1176 = vmul.f32 %v1168, %v1174
        %v1178 = vrot.slane %v1176, 3
        %v1180 = vadd.f32 %v1173, %v1178
        %v1181 = vrot.slane %v1009, 4
        %v1183 = vmul.f32 %v1168, %v1181
        %v1185 = vrot.slane %v1183, 6
        %v1187 = vadd.f32 %v1180, %v1185
        %v1189 = vrot.slane %v1171, 1
        %v1191 = vadd.f32 %v1187, %v1189
        %v1192 = vrot.slane %v1009, 7
        %v1194 = vmul.f32 %v1168, %v1192
        %v1195 = vrot.slane %v1009, 5
        %v1197 = vmul.f32 %v1168, %v1195
        %v1199 = vrot.slane %v1197, 3
        %v1201 = vadd.f32 %v1194, %v1199
        %v1202 = vrot.slane %v1009, 3
        %v1204 = vmul.f32 %v1168, %v1202
        %v1206 = vrot.slane %v1204, 6
        %v1208 = vadd.f32 %v1201, %v1206
        %v1209 = vadd.f32 %v1208, %v1189
        %v1210 = vrot.slane %v1183, 3
        %v1212 = vadd.f32 %v1176, %v1210
        %v1213 = vrot.slane %v1009, 2
        %v1215 = vmul.f32 %v1171, %v1213
        %v1217 = vrot.slane %v1215, 6
        %v1219 = vadd.f32 %v1212, %v1217
        %v1220 = vadd.f32 %v1219, %v1189
        %v1221 = vsel %vm848, %v1191, %v1209
        %v1222 = vsel %vm850, %v1221, %v1220
        %v1223 = vsub.f32 %v1222, %v475
        %v1224 = vsub.f32 %v1223, %v990
        %v1225 = vsel %vm1006, %v1224, %v995
        %v1226 = vadd.f32 %v990, %v1225
        %v1227 = vsel %vm1006, %v1226, %v990
        %v1228 = vmul.f32 %v1227, %v1227
        %v1229 = vsel %vm516, %v1228, 0.0
        %v1230 = vrot.slane %v1229, 4
        %v1231 = vadd.f32 %v1229, %v1230
        %v1232 = vrot.slane %v1231, 2
        %v1233 = vadd.f32 %v1231, %v1232
        %v1234 = vrot.slane %v1233, 1
        %v1235 = vadd.f32 %v1233, %v1234
        %v1236 = vrsqrt.pop %v1235
        %v1237 = vmul.f32 %v1236, %v1235
        %v1238 = vmul.f32 %v1237, %v1236
        %v1239 = vmul.f32 0.5, %v1238
        %v1240 = vsub.f32 1.5, %v1239
        %v1241 = vmul.f32 %v1236, %v1240
        %v1242 = vmul.f32 %v1235, %v1241
        %vm1243 = vcmp.eq.f32.partialorder %v1235, inf
        %v1244 = vsel %vm1243, %v1235, %v1242
        %vm1245 = vcmp.eq.f32.partialorder %v1235, 0.0
        %v1246 = vand.u32 %v1235, 2147483648
        %v1247 = vsel %vm1245, %v1246, %v1244
        %v1248 = vmin.f32 %v1247, %v996
        %vm1249 = vcmp.gt.f32.partialorder %v1248, 1e-05
        %vm1250 = vmand %vm482, %vm1249
        %vm1251 = vcmp.lt.f32.partialorder %v1247, 1.0
        %vm1252 = vmand %vm1250, %vm1251
        %v1253 = vmul.f32 %v1007, %v991
        %v1255 = vrot.slane %v991, 2
        %v1257 = vmul.f32 %v1007, %v1255
        %v1259 = vrot.slane %v1257, 1
        %v1261 = vadd.f32 %v1253, %v1259
        %v1262 = vrot.slane %v991, 4
        %v1264 = vmul.f32 %v1007, %v1262
        %v1266 = vrot.slane %v1264, 2
        %v1268 = vadd.f32 %v1261, %v1266
        %v1269 = vrot.slane %v991, 1
        %v1271 = vmul.f32 %v1007, %v1269
        %v1272 = vrot.slane %v991, 3
        %v1274 = vmul.f32 %v1007, %v1272
        %v1276 = vrot.slane %v1274, 1
        %v1278 = vadd.f32 %v1271, %v1276
        %v1279 = vrot.slane %v991, 5
        %v1281 = vmul.f32 %v1007, %v1279
        %v1283 = vrot.slane %v1281, 2
        %v1285 = vadd.f32 %v1278, %v1283
        %v1286 = vrot.slane %v1264, 1
        %v1288 = vadd.f32 %v1257, %v1286
        %v1290 = vrot.slane %v992, 6
        %v1292 = vmul.f32 %v1007, %v1290
        %v1294 = vrot.slane %v1292, 2
        %v1296 = vadd.f32 %v1288, %v1294
        %v1298 = vrot.slane %v1285, 7
        %v1301 = vrot.slane %v1296, 6
        %v1303 = vsel %vm848, %v1268, %v1298
        %v1304 = vsel %vm850, %v1303, %v1301
        %v1305 = vmul.f32 %v991, %v1225
        %v1307 = vrot.slane %v1305, 1
        %v1309 = vadd.f32 %v1305, %v1307
        %v1310 = vrot.slane %v1305, 2
        %v1312 = vadd.f32 %v1309, %v1310
        %v1314 = vrot.slane %v1225, 5
        %v1316 = vmul.f32 %v991, %v1314
        %v1318 = vrot.slane %v1316, 1
        %v1320 = vadd.f32 %v1316, %v1318
        %v1321 = vrot.slane %v1316, 2
        %v1323 = vadd.f32 %v1320, %v1321
        %v1324 = vrot.slane %v1225, 2
        %v1326 = vmul.f32 %v991, %v1324
        %v1328 = vrot.slane %v1326, 1
        %v1330 = vadd.f32 %v1326, %v1328
        %v1331 = vmul.f32 %v992, %v1324
        %v1333 = vrot.slane %v1331, 2
        %v1335 = vadd.f32 %v1330, %v1333
        %v1337 = vrot.slane %v1323, 2
        %v1340 = vrot.slane %v1335, 4
        %v1342 = vsel %vm848, %v1312, %v1337
        %v1343 = vsel %vm850, %v1342, %v1340
        %v1344 = vsub.f32 %v1007, %v1343
        %v1345 = vmul.f32 %v1304, %v1225
        %v1346 = vsel %vm516, %v1345, 0.0
        %v1347 = vrot.slane %v1346, 4
        %v1348 = vadd.f32 %v1346, %v1347
        %v1349 = vrot.slane %v1348, 2
        %v1350 = vadd.f32 %v1348, %v1349
        %v1351 = vrot.slane %v1350, 1
        %v1352 = vadd.f32 %v1350, %v1351
        %vm1353 = vcmp.ge.f32.partialorder %v1352, 0.0
        %v1354 = vadd.f32 %v1352, 1e-06
        %v1355 = vsub.f32 %v1352, 1e-06
        %v1356 = vsel %vm1353, %v1354, %v1355
        %v1357 = vrcp.pop %v1356
        %v1358 = vmul.f32 %v1356, %v1357
        %v1359 = vsub.f32 1.0, %v1358
        %v1360 = vmul.f32 %v1357, %v1359
        %v1361 = vadd.f32 %v1357, %v1360
        %vm1362 = vweird.f32 %v1356
        %vm1363 = vweird.f32 %v1357
        %vm1364 = vmor %vm1362, %vm1363
        %v1365 = vsel %vm1364, %v1357, %v1361
        %v1366 = vand.u32 2147483647, %v1356
        %vm1367 = vcmp.eq.f32.partialorder %v1366, 8.507059e+37
        %v1368 = vand.u32 %v1356, 2147483648
        %v1369 = vor.u32 1.1754944e-38, %v1368
        %v1370 = vsel %vm1367, %v1369, %v1365
        %v1371 = vmul.f32 %v1344, %v1370
        %v1372 = vmul.f32 %v1371, %v1304
        %v1374 = vrot.slane %v1304, 1
        %v1376 = vmul.f32 %v1371, %v1374
        %v1377 = vrot.slane %v1304, 2
        %v1379 = vmul.f32 %v1371, %v1377
        %v1380 = vrot.slane %v1304, 7
        %v1382 = vmul.f32 %v1371, %v1380
        %v1383 = vrot.slane %v1304, 6
        %v1385 = vmul.f32 %v1371, %v1383
        %v1387 = vrot.slane %v1376, 7
        %v1390 = vrot.slane %v1379, 6
        %v1393 = vrot.slane %v1382, 6
        %v1396 = vrot.slane %v1372, 5
        %v1398 = vrot.slane %v1376, 4
        %v1401 = vrot.slane %v1385, 4
        %v1403 = vrot.slane %v1382, 3
        %v1405 = vrot.slane %v1372, 2
        %v1407 = vsel %vm848, %v1372, %v1387
        %v1408 = vsel %vm850, %v1407, %v1390
        %v1409 = vsel %vm516, %v1408, %v1393
        %v1410 = vsel %vm853, %v1409, %v1396
        %v1411 = vsel %vm855, %v1410, %v1398
        %v1412 = vsel %vm857, %v1411, %v1401
        %v1413 = vsel %vm859, %v1412, %v1403
        %v1414 = vadd.f32 %v991, %v1413
        %v1415 = vadd.f32 %v992, %v1405
        %v1416 = vsel %vm1252, 1, 0
        %vm1417 = vcmp.eq.s32.totalorder %v1416, 1
        %v1418 = vsel %vm1417, %v1414, %v991
        %v1419 = vsel %vm1417, %v1415, %v992
        %v1420 = vmul.f32 %v1418, %v1227
        %v1422 = vrot.slane %v1420, 1
        %v1424 = vadd.f32 %v1420, %v1422
        %v1425 = vrot.slane %v1420, 2
        %v1427 = vadd.f32 %v1424, %v1425
        %v1429 = vrot.slane %v1227, 5
        %v1431 = vmul.f32 %v1418, %v1429
        %v1433 = vrot.slane %v1431, 1
        %v1435 = vadd.f32 %v1431, %v1433
        %v1436 = vrot.slane %v1431, 2
        %v1438 = vadd.f32 %v1435, %v1436
        %v1439 = vrot.slane %v1227, 2
        %v1441 = vmul.f32 %v1418, %v1439
        %v1443 = vrot.slane %v1441, 1
        %v1445 = vadd.f32 %v1441, %v1443
        %v1446 = vmul.f32 %v1419, %v1439
        %v1448 = vrot.slane %v1446, 2
        %v1450 = vadd.f32 %v1445, %v1448
        %v1452 = vrot.slane %v1438, 2
        %v1455 = vrot.slane %v1450, 4
        %v1457 = vsel %vm848, %v1427, %v1452
        %v1458 = vsel %vm850, %v1457, %v1455
        %v1459 = vsub.f32 0.0, %v1458
        %v1460 = vcvt.s32.f32 %v1416
        %s1461 = sadd.s32 %s987, 1
        %v1462 = vsel %vm848, %v1460, 0.0
        %1463 = vadd.xlane.f32.xlu0 %v1462
        %v1464 = vpop.xlane.xlu0 %1463
        %v1465 = vrot.slane %v1464, 4
        %v1466 = vadd.f32 %v1464, %v1465
        %v1467 = vrot.slane %v1466, 2
        %v1468 = vadd.f32 %v1466, %v1467
        %v1469 = vrot.slane %v1468, 1
        %v1470 = vadd.f32 %v1468, %v1469
        %s1471 = vtos %v1470
      $region61: #{_search_impl.1} parent=55 // loop_footer
        _
      $region62: #{_search_impl.1} parent=55 // loop_footer_branch
        %986 = sbr.rel target = $region58
      $region63: #{_search_impl.1} parent=55 // loop_exit
        _
      %1472 = vst [vmem:[%s444] sm:$0x7] %v989
      %1473 = vst [vmem:[%s450] sm:$0x1] %v996
      %p1474 = scmp.lt.s32.totalorder %s26, 1
      %s1475 = scalar_select %p1474, %s26, 1
      %p1476 = scmp.lt.s32.totalorder %s27, 0
      %s1477 = scalar_select %p1476, %s27, 0
      %s1478 = sadd.s32 %s1477, %s1475
      %s1479 = smul.addr %s1478, 4
      %s1480 = scalar_lea.vmem %s9, %s1479
      %p1481 = scmp.lt.s32.totalorder %s26, 1
      %s1482 = scalar_select %p1481, %s26, 1
      %p1483 = scmp.lt.s32.totalorder %s27, 0
      %s1484 = scalar_select %p1483, %s27, 0
      %s1485 = sadd.s32 %s1484, %s1482
      %s1486 = scalar_lea.vmem %s10, %s1485
      // Predicated region
      $region64: #{_search_impl.1} parent=55 // pred_check
        %p1487 = pneg %p262
      $region65: #{_search_impl.1} parent=55 // pred_check_branch
        %1489 = sbr.rel (%p1487) target = $region67
      $region66: #{_search_impl.1} parent=55 // pred_region
        _
      $region67: #{_search_impl.1} parent=55 // pred_fallthru
        _
      // Predicated region
      $region68: #{_search_impl.1} parent=55 // pred_check
        %p1490 = pneg %p290
      $region69: #{_search_impl.1} parent=55 // pred_check_branch
        %1492 = sbr.rel (%p1490) target = $region71
      $region70: #{_search_impl.1} parent=55 // pred_region
        _
      $region71: #{_search_impl.1} parent=55 // pred_fallthru
        _
    $region56: #{_search_impl.1} parent=5 // pred_fallthru
      _
    %p1493 = scmp.le.s32.totalorder 2, %s17
    // Predicated region
    $region72: #{_search_impl.1} parent=5 // pred_check
      %p1494 = pneg %p1493
    $region73: #{_search_impl.1} parent=5 // pred_check_branch
      %1496 = sbr.rel (%p1494) target = $region75
    $region74: #{_search_impl.1} parent=5 // pred_region
      %s1497 = ssub.s32 %s17, 2
      // Predicated region
      $region76: #{_search_impl.1} parent=74 // pred_check
        %p1498 = pneg %p268
      $region77: #{_search_impl.1} parent=74 // pred_check_branch
        %1500 = sbr.rel (%p1498) target = $region79
      $region78: #{_search_impl.1} parent=74 // pred_region
        %p1501 = scmp.lt.s32.totalorder %s28, 1
        %s1502 = scalar_select %p1501, %s28, 1
        %p1503 = scmp.lt.s32.totalorder %s29, 0
        %s1504 = scalar_select %p1503, %s29, 0
        %s1505 = sadd.s32 %s1504, %s1502
        %s1506 = smul.addr %s1505, 4
        %s1507 = scalar_lea.vmem %s9, %s1506
      $region79: #{_search_impl.1} parent=74 // pred_fallthru
        _
      // Predicated region
      $region80: #{_search_impl.1} parent=74 // pred_check
        %p1508 = pneg %p296
      $region81: #{_search_impl.1} parent=74 // pred_check_branch
        %1510 = sbr.rel (%p1508) target = $region83
      $region82: #{_search_impl.1} parent=74 // pred_region
        %p1511 = scmp.lt.s32.totalorder %s28, 1
        %s1512 = scalar_select %p1511, %s28, 1
        %p1513 = scmp.lt.s32.totalorder %s29, 0
        %s1514 = scalar_select %p1513, %s29, 0
        %s1515 = sadd.s32 %s1514, %s1512
        %s1516 = scalar_lea.vmem %s10, %s1515
      $region83: #{_search_impl.1} parent=74 // pred_fallthru
        _
    $region75: #{_search_impl.1} parent=5 // pred_fallthru
      _
  $region6: #{_search_impl.1} parent=0 // loop_footer
    %s21 = sadd.s32 1, %s17
  $region7: #{_search_impl.1} parent=0 // loop_footer_branch
    %16 = sbr.rel target = $region3
  $region8: #{_search_impl.1} parent=0 // loop_exit
    _

</llo_original>
